<compile_context>
chip_gen: v6e
topology: v6e:2x2x1
jax: 0.10.0
libtpu: 0.0.40
codegen_flags: <defaults>
</compile_context>

<pallas_src>
import functools

import jax
import jax.numpy as jnp
from jax import lax
from jax.experimental import pallas as pl
from jax.experimental.pallas import tpu as pltpu


# -----------------------------------------------------------------------------
# Helpers
# -----------------------------------------------------------------------------
def _pick_hw_tile(hw, c, target_bytes=2 << 20):
    """Lane tile sized by bytes (~target per (c, tile) f32 block), 128-multiple."""
    if hw <= 128:
        # Tiny maps: take the whole (sub-128) extent; masked stores are cheap here.
        # TODO(synk): fold batch into the lane axis for sub-128 maps if they matter.
        return hw
    max_tile = max(128, (target_bytes // (4 * c)) // 128 * 128)
    hw_pad = ((hw + 127) // 128) * 128
    return min(max_tile, hw_pad)


def _vmem_limit_bytes():
    """Per-generation scoped-VMEM limit (3/4 of physical, capped at 96 MiB)."""
    try:
        cap = int(pltpu.get_tpu_info().vmem_capacity_bytes)
    except Exception:          # conservative fallback (v7x has 64 MiB physical)
        cap = 64 << 20
    return min(96 << 20, (cap * 3) // 4)


# -----------------------------------------------------------------------------
# SCSE
# -----------------------------------------------------------------------------
def _scse_gate_kernel(x_ref, w1_ref, b1_ref, w2_ref, b2_ref, cse_ref, acc_ref,
                      *, hw, tile):
    """Tiled global-avg-pool reduction fused with the cSE MLP on the last step."""
    j = pl.program_id(1)

    @pl.when(j == 0)
    def _():
        acc_ref[...] = jnp.zeros(acc_ref.shape, acc_ref.dtype)

    lane = j * tile + lax.broadcasted_iota(jnp.int32, x_ref.shape, 1)
    x = jnp.where(lane < hw, x_ref[...], 0.0)              # mask ragged lanes
    acc_ref[...] += jnp.sum(x, axis=1, keepdims=True)

    @pl.when(j == pl.num_programs(1) - 1)
    def _():
        pooled = acc_ref[...] * (1.0 / hw)                  # (C, 1)
        h = jnp.maximum(
            jnp.dot(w1_ref[...], pooled, preferred_element_type=jnp.float32)
            + b1_ref[...], 0.0)
        cse_ref[...] = jax.nn.sigmoid(
            jnp.dot(w2_ref[...], h, preferred_element_type=jnp.float32)
            + b2_ref[...])


def _scse_apply_kernel(x_ref, cse_ref, ws_ref, bs_ref, o_ref):
    x = x_ref[...]                                          # (C, tile)
    sse = jax.nn.sigmoid(
        jnp.dot(ws_ref[...], x, preferred_element_type=jnp.float32) + bs_ref[...])
    # x*cse + x*sse == x * (cse + sse)
    o_ref[...] = (x * (cse_ref[...] + sse)).astype(o_ref.dtype)


def scse_forward(x, p):
    B, C, H, W = x.shape
    HW = H * W
    Cr = p["w1"].shape[0]
    tile = _pick_hw_tile(HW, C)
    T = pl.cdiv(HW, tile)
    xf = x.reshape(B, C, HW)

    # 1) tiled global average pooling fused with the cSE MLP (one pallas_call)
    cse = pl.pallas_call(
        functools.partial(_scse_gate_kernel, hw=HW, tile=tile),
        out_shape=jax.ShapeDtypeStruct((B, C, 1), jnp.float32),
        grid=(B, T),
        in_specs=[pl.BlockSpec((None, C, tile), lambda b, j: (b, 0, j)),
                  pl.BlockSpec((Cr, C), lambda b, j: (0, 0)),
                  pl.BlockSpec((Cr, 1), lambda b, j: (0, 0)),
                  pl.BlockSpec((C, Cr), lambda b, j: (0, 0)),
                  pl.BlockSpec((C, 1), lambda b, j: (0, 0))],
        out_specs=pl.BlockSpec((None, C, 1), lambda b, j: (b, 0, 0)),
        scratch_shapes=[pltpu.VMEM((C, 1), jnp.float32)],
        compiler_params=pltpu.CompilerParams(
            dimension_semantics=("parallel", "arbitrary")),
    )(xf, p["w1"], p["b1"], p["w2"], p["b2"])

    # 2) tiled apply: x * cse + x * sigmoid(ws @ x + bs)
    out = pl.pallas_call(
        _scse_apply_kernel,
        out_shape=jax.ShapeDtypeStruct((B, C, HW), x.dtype),
        grid=(B, T),
        in_specs=[pl.BlockSpec((None, C, tile), lambda b, j: (b, 0, j)),
                  pl.BlockSpec((None, C, 1), lambda b, j: (b, 0, 0)),
                  pl.BlockSpec((1, C), lambda b, j: (0, 0)),
                  pl.BlockSpec((1, 1), lambda b, j: (0, 0))],
        out_specs=pl.BlockSpec((None, C, tile), lambda b, j: (b, 0, j)),
        compiler_params=pltpu.CompilerParams(
            dimension_semantics=("parallel", "parallel")),
    )(xf, cse, p["ws"], p["bs"])
    return out.reshape(B, C, H, W)


scse_forward = jax.jit(scse_forward)


# -----------------------------------------------------------------------------
# CBAM
# -----------------------------------------------------------------------------
def _cbam_gate_kernel(x_ref, w1_ref, w2_ref, ca_ref, sum_ref, max_ref, *, hw, tile):
    """Tiled avg/max pooling reduction fused with the shared MLP (run on (C,2))."""
    j = pl.program_id(1)

    @pl.when(j == 0)
    def _():
        sum_ref[...] = jnp.zeros(sum_ref.shape, sum_ref.dtype)
        max_ref[...] = jnp.full(max_ref.shape, -jnp.inf, max_ref.dtype)

    lane = j * tile + lax.broadcasted_iota(jnp.int32, x_ref.shape, 1)
    valid = lane < hw
    x = x_ref[...]                                          # (C, tile)
    sum_ref[...] += jnp.sum(jnp.where(valid, x, 0.0), axis=1, keepdims=True)
    max_ref[...] = jnp.maximum(
        max_ref[...], jnp.max(jnp.where(valid, x, -jnp.inf), axis=1, keepdims=True))

    @pl.when(j == pl.num_programs(1) - 1)
    def _():
        stats = jnp.concatenate([sum_ref[...] * (1.0 / hw), max_ref[...]], axis=1)
        h = jnp.maximum(
            jnp.dot(w1_ref[...], stats, preferred_element_type=jnp.float32), 0.0)
        o = jnp.dot(w2_ref[...], h, preferred_element_type=jnp.float32)   # (C, 2)
        ca_ref[...] = jax.nn.sigmoid(jnp.sum(o, axis=1, keepdims=True))   # (C, 1)


def _cbam_spool_kernel(x_ref, ca_ref, pool_ref):
    out1 = x_ref[...] * ca_ref[...]                         # channel-attended tile
    mean_c = jnp.mean(out1, axis=0, keepdims=True)          # (1, tile)
    max_c = jnp.max(out1, axis=0, keepdims=True)            # (1, tile)
    pool_ref[...] = jnp.concatenate([mean_c, max_c], axis=0).astype(pool_ref.dtype)


def _cbam_sconv_kernel(pool_ref, wc_ref, bc_ref, sa_ref, *, h, w):
    """7x7 conv on the padded 2-channel pooled map, kept entirely in VMEM.

    98 shifted FMAs with scalar weights from SMEM -- no im2col stream and no
    M=1/K=98 MXU matmul.  The map is (2, H+6, W+6) so this stays tiny.
    """
    pool = pool_ref[...]                                    # (2, h+6, w+6)
    acc = jnp.zeros((h, w), jnp.float32) + bc_ref[0]
    for c in range(2):
        for kh in range(7):
            for kw in range(7):
                wgt = wc_ref[c * 49 + kh * 7 + kw]
                acc = acc + wgt * pool[c, kh:kh + h, kw:kw + w]
    sa_ref[...] = jax.nn.sigmoid(acc)


def _cbam_apply_kernel(x_ref, ca_ref, sa_ref, o_ref):
    # (x * ca) * sa, fully elementwise per tile (sa is (1, tile), ca is (C, 1)).
    o_ref[...] = (x_ref[...] * ca_ref[...] * sa_ref[...]).astype(o_ref.dtype)


def cbam_forward(x, p):
    B, C, H, W = x.shape
    HW = H * W
    Cr = p["w1"].shape[0]
    tile = _pick_hw_tile(HW, C)
    T = pl.cdiv(HW, tile)
    xf = x.reshape(B, C, HW)

    # 1) channel gate: tiled avg/max pooling reduction + batched (C,2) MLP
    ca = pl.pallas_call(
        functools.partial(_cbam_gate_kernel, hw=HW, tile=tile),
        out_shape=jax.ShapeDtypeStruct((B, C, 1), jnp.float32),
        grid=(B, T),
        in_specs=[pl.BlockSpec((None, C, tile), lambda b, j: (b, 0, j)),
                  pl.BlockSpec((Cr, C), lambda b, j: (0, 0)),
                  pl.BlockSpec((C, Cr), lambda b, j: (0, 0))],
        out_specs=pl.BlockSpec((None, C, 1), lambda b, j: (b, 0, 0)),
        scratch_shapes=[pltpu.VMEM((C, 1), jnp.float32),
                        pltpu.VMEM((C, 1), jnp.float32)],
        compiler_params=pltpu.CompilerParams(
            dimension_semantics=("parallel", "arbitrary")),
    )(xf, p["w1"], p["w2"])

    # 2) channel mean / max of x*ca (only the tiny (2, HW) map hits HBM)
    pool = pl.pallas_call(
        _cbam_spool_kernel,
        out_shape=jax.ShapeDtypeStruct((B, 2, HW), jnp.float32),
        grid=(B, T),
        in_specs=[pl.BlockSpec((None, C, tile), lambda b, j: (b, 0, j)),
                  pl.BlockSpec((None, C, 1), lambda b, j: (b, 0, 0))],
        out_specs=pl.BlockSpec((None, 2, tile), lambda b, j: (b, 0, j)),
        compiler_params=pltpu.CompilerParams(
            dimension_semantics=("parallel", "parallel")),
    )(xf, ca)

    # 3) 7x7 spatial conv on the tiny pooled map (per batch, whole map in VMEM)
    pool_pad = jnp.pad(pool.reshape(B, 2, H, W), ((0, 0), (0, 0), (3, 3), (3, 3)))
    wc_flat = p["wc"].reshape(98)
    bc_flat = p["bc"].reshape(1)
    sa_img = pl.pallas_call(
        functools.partial(_cbam_sconv_kernel, h=H, w=W),
        out_shape=jax.ShapeDtypeStruct((B, H, W), jnp.float32),
        grid=(B,),
        in_specs=[pl.BlockSpec((None, 2, H + 6, W + 6), lambda b: (b, 0, 0, 0)),
                  pl.BlockSpec(memory_space=pltpu.MemorySpace.SMEM),
                  pl.BlockSpec(memory_space=pltpu.MemorySpace.SMEM)],
        out_specs=pl.BlockSpec((None, H, W), lambda b: (b, 0, 0)),
        compiler_params=pltpu.CompilerParams(dimension_semantics=("parallel",)),
    )(pool_pad, wc_flat, bc_flat)
    sa = sa_img.reshape(B, 1, HW)

    # 4) fused channel + spatial apply, tiled over HW (reads only x, ca, sa)
    out = pl.pallas_call(
        _cbam_apply_kernel,
        out_shape=jax.ShapeDtypeStruct((B, C, HW), x.dtype),
        grid=(B, T),
        in_specs=[pl.BlockSpec((None, C, tile), lambda b, j: (b, 0, j)),
                  pl.BlockSpec((None, C, 1), lambda b, j: (b, 0, 0)),
                  pl.BlockSpec((None, 1, tile), lambda b, j: (b, 0, j))],
        out_specs=pl.BlockSpec((None, C, tile), lambda b, j: (b, 0, j)),
        compiler_params=pltpu.CompilerParams(
            dimension_semantics=("parallel", "parallel")),
    )(xf, ca, sa)
    return out.reshape(B, C, H, W)


cbam_forward = jax.jit(cbam_forward)


# -----------------------------------------------------------------------------
# NonLocal (fused: projection + key-tiled score/softmax/PV + mask + residual)
# -----------------------------------------------------------------------------
def _nl_key_tile(n, kt_max=512):
    if n <= 128:
        return n
    if n <= kt_max:
        return ((n + 127) // 128) * 128
    return kt_max


def _nl_fused_kernel(x_ref, w_all_ref, w_mask_ref, o_ref, *, ci, n, kt, mxu_dtype):
    dn_t = (((0,), (0,)), ((), ()))       # contract sublane dims (lhs^T @ rhs)
    dn_k = (((1,), (1,)), ((), ()))       # contract lane dims    (lhs @ rhs^T)

    x = x_ref[...]                                            # (C, HW), HW = 2n
    proj = jnp.dot(w_all_ref[...].astype(mxu_dtype), x.astype(mxu_dtype),
                   preferred_element_type=jnp.float32)        # (3*Ci, HW)

    # The reference's .view(b, c, -1) reinterprets (Ci, HW) row-major memory as
    # (C, n): view-row 2i is channel i's first n lanes, row 2i+1 its last n.
    # Stacking the two lane-halves along sublanes yields the (2Ci, n) operand of
    # the view-space matmuls as a single merged K=2Ci contraction.
    def stack_halves(t):
        return jnp.concatenate([t[:, :n], t[:, n:]], axis=0)  # (2Ci, n)

    theta = stack_halves(proj[ci:2 * ci]).astype(mxu_dtype)
    phi = stack_halves(proj[0:ci])
    g = stack_halves(proj[2 * ci:3 * ci])

    nkt = -(-n // kt)
    pad = nkt * kt - n
    if pad:
        # Zero key-columns: their softmax column is uniform but multiplies a
        # zero g column, so they contribute nothing.
        zeros = jnp.zeros((2 * ci, pad), phi.dtype)
        phi = jnp.concatenate([phi, zeros], axis=1)
        g = jnp.concatenate([g, zeros], axis=1)
    phi = phi.astype(mxu_dtype)
    g = g.astype(mxu_dtype)

    def key_step(i, y_acc):
        ph = lax.dynamic_slice_in_dim(phi, i * kt, kt, axis=1)   # (2Ci, kt)
        gt = lax.dynamic_slice_in_dim(g, i * kt, kt, axis=1)     # (2Ci, kt)
        s = lax.dot_general(theta, ph, dn_t,
                            preferred_element_type=jnp.float32)  # (n, kt)
        # torch softmax(dim=1) on (B, N, N) normalizes over the *query* axis for
        # each key column, so the per-column softmax is local to this key tile:
        # no online rescaling needed.  Exact divide (EUP slot has slack).
        s = s - jnp.max(s, axis=0, keepdims=True)
        e = jnp.exp(s)
        prob = e / jnp.sum(e, axis=0, keepdims=True)
        return y_acc + lax.dot_general(prob.astype(mxu_dtype), gt, dn_k,
                                       preferred_element_type=jnp.float32)

    y0 = jnp.zeros((n, 2 * ci), jnp.float32)
    y = key_step(0, y0) if nkt == 1 else lax.fori_loop(0, nkt, key_step, y0)

    wm = w_mask_ref[...].astype(mxu_dtype)                    # (C, Ci)
    y = y.astype(mxu_dtype)
    m_lo = lax.dot_general(wm, y[:, :ci], dn_k,
                           preferred_element_type=jnp.float32)   # (C, n)
    m_hi = lax.dot_general(wm, y[:, ci:], dn_k,
                           preferred_element_type=jnp.float32)   # (C, n)
    # Write the two halves directly: no (C, HW) concat temporary at peak VMEM.
    o_ref[:, :n] = (m_lo + x[:, :n]).astype(o_ref.dtype)
    o_ref[:, n:] = (m_hi + x[:, n:]).astype(o_ref.dtype)


def nonlocal_forward(x, p, mxu_dtype=jnp.bfloat16):
    B, C, H, W = x.shape
    HW = H * W
    assert HW % 2 == 0, "NonLocal's view(b, c, -1) requires an even H*W"
    Ci = C // 2
    n = HW // 2                 # == (Ci * HW) // C, the reference's view length
    kt = _nl_key_tile(n)
    xf = x.reshape(B, C, HW)
    w_all = jnp.concatenate([p["w_phi"], p["w_theta"], p["w_g"]], axis=0)  # (3Ci,C)

    # TODO(synk): for single-image (B==1) inference on v7x, add a query-axis
    # parallel grid dimension so both TensorCores are used.
    out = pl.pallas_call(
        functools.partial(_nl_fused_kernel, ci=Ci, n=n, kt=kt, mxu_dtype=mxu_dtype),
        out_shape=jax.ShapeDtypeStruct((B, C, HW), x.dtype),
        grid=(B,),
        in_specs=[pl.BlockSpec((None, C, HW), lambda b: (b, 0, 0)),
                  pl.BlockSpec((3 * Ci, C), lambda b: (0, 0)),
                  pl.BlockSpec((C, Ci), lambda b: (0, 0))],
        out_specs=pl.BlockSpec((None, C, HW), lambda b: (b, 0, 0)),
        compiler_params=pltpu.CompilerParams(
            dimension_semantics=("parallel",),
            vmem_limit_bytes=_vmem_limit_bytes()),
    )(xf, w_all, p["w_mask"])
    return out.reshape(B, C, H, W)


nonlocal_forward = jax.jit(nonlocal_forward, static_argnames=("mxu_dtype",))


# -----------------------------------------------------------------------------
# Deterministic parameter initialization (synthetic weights, not a checkpoint)
# -----------------------------------------------------------------------------
def _randn(key, shape, scale=0.2):
    return scale * jax.random.normal(key, shape, jnp.float32)


def init_scse_params(C, reduction=16):
    Cr = max(C // reduction, 1)
    k = jax.random.split(jax.random.PRNGKey(1), 6)
    return dict(w1=_randn(k[0], (Cr, C)), b1=_randn(k[1], (Cr, 1)),
                w2=_randn(k[2], (C, Cr)), b2=_randn(k[3], (C, 1)),
                ws=_randn(k[4], (1, C)), bs=_randn(k[5], (1, 1)))


def init_cbam_params(C, ratio=16):
    Cr = max(C // ratio, 1)
    k = jax.random.split(jax.random.PRNGKey(2), 4)
    return dict(w1=_randn(k[0], (Cr, C)),            # shared MLP conv1 (no bias)
                w2=_randn(k[1], (C, Cr)),            # shared MLP conv2 (no bias)
                wc=_randn(k[2], (2, 7, 7)),          # conv2d(2->1, k=7) weight
                bc=_randn(k[3], (1, 1)))             # conv2d(2->1) bias


def init_nonlocal_params(C):
    Ci = C // 2
    k = jax.random.split(jax.random.PRNGKey(3), 4)
    return dict(w_phi=_randn(k[0], (Ci, C)), w_theta=_randn(k[1], (Ci, C)),
                w_g=_randn(k[2], (Ci, C)), w_mask=_randn(k[3], (C, Ci)))


# -----------------------------------------------------------------------------
# Attention dispatcher (mirrors the PyTorch module)
# -----------------------------------------------------------------------------
class Attention:
    def __init__(self, name, **params):
        self.name = name
        if name is None:
            self.params = None                      # nn.Identity
        elif name == "scse":
            self.params = init_scse_params(params["in_channels"],
                                           params.get("reduction", 16))
        elif name == "cbam":
            self.params = init_cbam_params(params["in_channels"])
        elif name == "nonlocal":
            self.params = init_nonlocal_params(params["in_channels"])
        else:
            raise ValueError("Attention {} is not implemented".format(name))

    def __call__(self, x):
        if self.name is None:
            return x
        if self.name == "scse":
            return scse_forward(x, self.params)
        if self.name == "cbam":
            return cbam_forward(x, self.params)
        return nonlocal_forward(x, self.params)


# -----------------------------------------------------------------------------
# Pure-JAX references (for correctness checks only)
# -----------------------------------------------------------------------------
def scse_ref(x, p):
    avg = jnp.mean(x, axis=(2, 3), keepdims=True)
    h = jnp.maximum(jnp.einsum('rc,bcij->brij', p["w1"], avg)
                    + p["b1"].reshape(1, -1, 1, 1), 0.0)
    cse = jax.nn.sigmoid(jnp.einsum('cr,brij->bcij', p["w2"], h)
                         + p["b2"].reshape(1, -1, 1, 1))
    sse = jax.nn.sigmoid(jnp.einsum('oc,bchw->bohw', p["ws"], x)
                         + p["bs"].reshape(1, 1, 1, 1))
    return x * cse + x * sse


def cbam_ref(x, p):
    avg = jnp.mean(x, axis=(2, 3))
    mx = jnp.max(x, axis=(2, 3))

    def mlp(v):
        h = jnp.maximum(v @ p["w1"].T, 0.0)
        return h @ p["w2"].T

    ca = jax.nn.sigmoid(mlp(avg) + mlp(mx))[:, :, None, None]
    out1 = x * ca
    pool = jnp.stack([jnp.mean(out1, axis=1), jnp.max(out1, axis=1)], axis=1)
    conv = lax.conv_general_dilated(pool, p["wc"][None], window_strides=(1, 1),
                                    padding=((3, 3), (3, 3)),
                                    dimension_numbers=('NCHW', 'OIHW', 'NCHW'))
    sa = jax.nn.sigmoid(conv + p["bc"].reshape(1, 1, 1, 1))
    return out1 * sa


def nonlocal_ref(x, p):
    B, C, H, W = x.shape
    Ci = C // 2
    HW = H * W
    N = (Ci * HW) // C

    def conv1x1(w, v):
        return jnp.einsum('oc,bchw->bohw', w, v)

    phi = conv1x1(p["w_phi"], x).reshape(B, C, N)
    theta = conv1x1(p["w_theta"], x).reshape(B, C, N).transpose(0, 2, 1)
    g = conv1x1(p["w_g"], x).reshape(B, C, N).transpose(0, 2, 1)
    s = jnp.einsum('bnc,bcm->bnm', theta, phi)
    prob = jax.nn.softmax(s, axis=1)
    y = jnp.einsum('bnm,bmc->bnc', prob, g)
    z = y.transpose(0, 2, 1).reshape(B, Ci, H, W)
    return conv1x1(p["w_mask"], z) + x


if __name__ == "__main__":
    B, C, H, W = 2, 32, 16, 16
    x = jax.random.normal(jax.random.PRNGKey(0), (B, C, H, W), jnp.float32)

    for name in (None, "scse", "cbam", "nonlocal"):
        attn = Attention(name, in_channels=C)
        y = jax.block_until_ready(attn(x))
        assert y.shape == (B, C, H, W), (name, y.shape)
        assert bool(jnp.all(jnp.isfinite(y))), name

        if name is None:
            ref, tol = x, 1e-6
        elif name == "scse":
            ref, tol = scse_ref(x, attn.params), 1e-3
        elif name == "cbam":
            ref, tol = cbam_ref(x, attn.params), 1e-3
        else:
            # default NonLocal path uses bf16 MXU inputs (f32 accumulation);
            # the softmax logits are sensitive to operand rounding, hence the
            # looser tolerance against the pure-f32 reference.
            ref, tol = nonlocal_ref(x, attn.params), 2.5e-1
        err = float(jnp.max(jnp.abs(y - ref)))
        assert err < tol, (name, err)

    # Structural check of the NonLocal kernel at full f32 MXU precision.
    nl = Attention("nonlocal", in_channels=C)
    y32 = jax.block_until_ready(
        nonlocal_forward(x, nl.params, mxu_dtype=jnp.float32))
    err32 = float(jnp.max(jnp.abs(y32 - nonlocal_ref(x, nl.params))))
    assert err32 < 5e-3, err32

    print("KERNEL_OK")
</pallas_src>

<mosaic_0001>
module attributes {stable_mosaic.version = 11 : i64} {
  func.func @_scse_gate_kernel(%arg0: i32, %arg1: i32, %arg2: memref<1x32x256xf32, #tpu.memory_space<vmem>>, %arg3: memref<2x32xf32, #tpu.memory_space<vmem>>, %arg4: memref<2x1xf32, #tpu.memory_space<vmem>>, %arg5: memref<32x2xf32, #tpu.memory_space<vmem>>, %arg6: memref<32x1xf32, #tpu.memory_space<vmem>>, %arg7: memref<1x32x1xf32, #tpu.memory_space<vmem>>, %arg8: memref<32x1xf32, #tpu.memory_space<vmem>>) attributes {dimension_semantics = [#tpu.dimension_semantics<parallel>, #tpu.dimension_semantics<arbitrary>], iteration_bounds = array<i64: 2, 1>, scalar_prefetch = 0 : i64, scratch_operands = 1 : i64, tpu.core_type = #tpu.core_type<tc>, window_params = [{transform_indices = @transform_0, window_bounds = array<i64: 1, 32, 256>}, {pipeline_mode = #tpu.pipeline_mode<synchronous>, transform_indices = @transform_1, window_bounds = array<i64: 2, 32>}, {pipeline_mode = #tpu.pipeline_mode<synchronous>, transform_indices = @transform_2, window_bounds = array<i64: 2, 1>}, {pipeline_mode = #tpu.pipeline_mode<synchronous>, transform_indices = @transform_3, window_bounds = array<i64: 32, 2>}, {pipeline_mode = #tpu.pipeline_mode<synchronous>, transform_indices = @transform_4, window_bounds = array<i64: 32, 1>}, {transform_indices = @transform_5, window_bounds = array<i64: 1, 32, 1>}]} {
    %c0_i32 = arith.constant 0 : i32
    %0 = arith.cmpi eq, %arg1, %c0_i32 : i32
    %1 = arith.extui %0 : i1 to i32
    %c0_i32_0 = arith.constant 0 : i32
    %2 = arith.cmpi ne, %1, %c0_i32_0 : i32
    scf.if %2 {
      %cst_11 = arith.constant 0.000000e+00 : f32
      %21 = vector.broadcast %cst_11 : f32 to vector<32x1xf32>
      %c0_12 = arith.constant 0 : index
      %c0_13 = arith.constant 0 : index
      %22 = vector.load %arg8[%c0_12, %c0_13] : memref<32x1xf32, #tpu.memory_space<vmem>>, vector<32x1xf32>
      tpu.vector_store %arg8[%c0_12, %c0_13], %21 {strides = array<i32>} : memref<32x1xf32, #tpu.memory_space<vmem>>, vector<32x1xf32>,
    } else {
    }
    %c256_i32 = arith.constant 256 : i32
    %3 = arith.muli %arg1, %c256_i32 : i32
    %4 = tpu.iota {dimensions = array<i32: 1>} : vector<32x256xi32>
    %5 = vector.broadcast %3 : i32 to vector<32x256xi32>
    %6 = arith.addi %5, %4 : vector<32x256xi32>
    %c256_i32_1 = arith.constant 256 : i32
    %7 = vector.broadcast %c256_i32_1 : i32 to vector<32x256xi32>
    %8 = arith.cmpi slt, %6, %7 : vector<32x256xi32>
    %c0 = arith.constant 0 : index
    %c0_2 = arith.constant 0 : index
    %c0_3 = arith.constant 0 : index
    %9 = vector.load %arg2[%c0, %c0_2, %c0_3] : memref<1x32x256xf32, #tpu.memory_space<vmem>>, vector<1x32x256xf32>
    %10 = vector.shape_cast %9 : vector<1x32x256xf32> to vector<32x256xf32>
    %cst = arith.constant 0.000000e+00 : f32
    %11 = vector.broadcast %cst : f32 to vector<32x256xf32>
    %12 = arith.select %8, %10, %11 : vector<32x256xi1>, vector<32x256xf32>
    %c0_4 = arith.constant 0 : index
    %c0_5 = arith.constant 0 : index
    %13 = vector.load %arg8[%c0_4, %c0_5] : memref<32x1xf32, #tpu.memory_space<vmem>>, vector<32x1xf32>
    %cst_6 = arith.constant dense<0.000000e+00> : vector<32xf32>
    %14 = vector.multi_reduction <add>, %12, %cst_6 [1] : vector<32x256xf32> to vector<32xf32>
    %15 = vector.shape_cast %14 : vector<32xf32> to vector<32x1xf32>
    %16 = arith.addf %13, %15 : vector<32x1xf32>
    %c0_7 = arith.constant 0 : index
    %c0_8 = arith.constant 0 : index
    %17 = vector.load %arg8[%c0_7, %c0_8] : memref<32x1xf32, #tpu.memory_space<vmem>>, vector<32x1xf32>
    tpu.vector_store %arg8[%c0_7, %c0_8], %16 {strides = array<i32>} : memref<32x1xf32, #tpu.memory_space<vmem>>, vector<32x1xf32>,
    %c0_i32_9 = arith.constant 0 : i32
    %18 = arith.cmpi eq, %arg1, %c0_i32_9 : i32
    %19 = arith.extui %18 : i1 to i32
    %c0_i32_10 = arith.constant 0 : i32
    %20 = arith.cmpi ne, %19, %c0_i32_10 : i32
    scf.if %20 {
      %c0_11 = arith.constant 0 : index
      %c0_12 = arith.constant 0 : index
      %21 = vector.load %arg8[%c0_11, %c0_12] : memref<32x1xf32, #tpu.memory_space<vmem>>, vector<32x1xf32>
      %cst_13 = arith.constant 3.906250e-03 : f32
      %22 = vector.broadcast %cst_13 : f32 to vector<32x1xf32>
      %23 = arith.mulf %21, %22 : vector<32x1xf32>
      %c0_14 = arith.constant 0 : index
      %c0_15 = arith.constant 0 : index
      %24 = vector.load %arg3[%c0_14, %c0_15] : memref<2x32xf32, #tpu.memory_space<vmem>>, vector<2x32xf32>
      %cst_16 = arith.constant dense<0.000000e+00> : vector<2x1xf32>
      %25 = tpu.matmul %24, %23, %cst_16 {dimension_numbers = #tpu.dot_dimension_numbers<[1], [0], [0], [1], [0, 0, 1, 1], [], []>} : vector<2x32xf32>, vector<32x1xf32>, vector<2x1xf32> -> vector<2x1xf32>
      %c0_17 = arith.constant 0 : index
      %c0_18 = arith.constant 0 : index
      %26 = vector.load %arg4[%c0_17, %c0_18] : memref<2x1xf32, #tpu.memory_space<vmem>>, vector<2x1xf32>
      %27 = arith.addf %25, %26 : vector<2x1xf32>
      %cst_19 = arith.constant 0.000000e+00 : f32
      %28 = vector.broadcast %cst_19 : f32 to vector<2x1xf32>
      %29 = arith.maximumf %27, %28 : vector<2x1xf32>
      %c0_20 = arith.constant 0 : index
      %c0_21 = arith.constant 0 : index
      %30 = vector.load %arg5[%c0_20, %c0_21] : memref<32x2xf32, #tpu.memory_space<vmem>>, vector<32x2xf32>
      %cst_22 = arith.constant dense<0.000000e+00> : vector<32x1xf32>
      %31 = tpu.matmul %30, %29, %cst_22 {dimension_numbers = #tpu.dot_dimension_numbers<[1], [0], [0], [1], [0, 0, 1, 1], [], []>} : vector<32x2xf32>, vector<2x1xf32>, vector<32x1xf32> -> vector<32x1xf32>
      %c0_23 = arith.constant 0 : index
      %c0_24 = arith.constant 0 : index
      %32 = vector.load %arg6[%c0_23, %c0_24] : memref<32x1xf32, #tpu.memory_space<vmem>>, vector<32x1xf32>
      %33 = arith.addf %31, %32 : vector<32x1xf32>
      %34 = arith.negf %33 : vector<32x1xf32>
      %35 = math.exp %34 : vector<32x1xf32>
      %cst_25 = arith.constant 1.000000e+00 : f32
      %36 = vector.broadcast %cst_25 : f32 to vector<32x1xf32>
      %37 = arith.addf %36, %35 : vector<32x1xf32>
      %38 = arith.divf %36, %37 : vector<32x1xf32>
      %c0_26 = arith.constant 0 : index
      %c0_27 = arith.constant 0 : index
      %c0_28 = arith.constant 0 : index
      %39 = vector.load %arg7[%c0_26, %c0_27, %c0_28] : memref<1x32x1xf32, #tpu.memory_space<vmem>>, vector<1x32x1xf32>
      %40 = vector.shape_cast %39 : vector<1x32x1xf32> to vector<32x1xf32>
      %41 = vector.shape_cast %38 : vector<32x1xf32> to vector<1x32x1xf32>
      tpu.vector_store %arg7[%c0_26, %c0_27, %c0_28], %41 {strides = array<i32>} : memref<1x32x1xf32, #tpu.memory_space<vmem>>, vector<1x32x1xf32>,
    } else {
    }
    return
  }
  func.func @transform_0(%arg0: i32, %arg1: i32) -> (i32, i32, i32) {
    %c0_i32 = arith.constant 0 : i32
    %c0_i32_0 = arith.constant 0 : i32
    return %arg0, %c0_i32, %arg1 : i32, i32, i32
  }
  func.func @transform_1(%arg0: i32, %arg1: i32) -> (i32, i32) {
    %c0_i32 = arith.constant 0 : i32
    %c0_i32_0 = arith.constant 0 : i32
    %c0_i32_1 = arith.constant 0 : i32
    return %c0_i32, %c0_i32_0 : i32, i32
  }
  func.func @transform_2(%arg0: i32, %arg1: i32) -> (i32, i32) {
    %c0_i32 = arith.constant 0 : i32
    %c0_i32_0 = arith.constant 0 : i32
    %c0_i32_1 = arith.constant 0 : i32
    return %c0_i32, %c0_i32_0 : i32, i32
  }
  func.func @transform_3(%arg0: i32, %arg1: i32) -> (i32, i32) {
    %c0_i32 = arith.constant 0 : i32
    %c0_i32_0 = arith.constant 0 : i32
    %c0_i32_1 = arith.constant 0 : i32
    return %c0_i32, %c0_i32_0 : i32, i32
  }
  func.func @transform_4(%arg0: i32, %arg1: i32) -> (i32, i32) {
    %c0_i32 = arith.constant 0 : i32
    %c0_i32_0 = arith.constant 0 : i32
    %c0_i32_1 = arith.constant 0 : i32
    return %c0_i32, %c0_i32_0 : i32, i32
  }
  func.func @transform_5(%arg0: i32, %arg1: i32) -> (i32, i32, i32) {
    %c0_i32 = arith.constant 0 : i32
    %c0_i32_0 = arith.constant 0 : i32
    %c0_i32_1 = arith.constant 0 : i32
    return %arg0, %c0_i32, %c0_i32_0 : i32, i32, i32
  }
}

module attributes {stable_mosaic.version = 11 : i64} {
  func.func @_scse_apply_kernel(%arg0: i32, %arg1: i32, %arg2: memref<1x32x256xf32, #tpu.memory_space<vmem>>, %arg3: memref<1x32x1xf32, #tpu.memory_space<vmem>>, %arg4: memref<1x32xf32, #tpu.memory_space<vmem>>, %arg5: memref<1x1xf32, #tpu.memory_space<vmem>>, %arg6: memref<1x32x256xf32, #tpu.memory_space<vmem>>) attributes {dimension_semantics = [#tpu.dimension_semantics<parallel>, #tpu.dimension_semantics<parallel>], iteration_bounds = array<i64: 2, 1>, scalar_prefetch = 0 : i64, scratch_operands = 0 : i64, tpu.core_type = #tpu.core_type<tc>, window_params = [{transform_indices = @transform_0, window_bounds = array<i64: 1, 32, 256>}, {transform_indices = @transform_1, window_bounds = array<i64: 1, 32, 1>}, {pipeline_mode = #tpu.pipeline_mode<synchronous>, transform_indices = @transform_2, window_bounds = array<i64: 1, 32>}, {pipeline_mode = #tpu.pipeline_mode<synchronous>, transform_indices = @transform_3, window_bounds = array<i64: 1, 1>}, {transform_indices = @transform_4, window_bounds = array<i64: 1, 32, 256>}]} {
    %c0 = arith.constant 0 : index
    %c0_0 = arith.constant 0 : index
    %c0_1 = arith.constant 0 : index
    %0 = vector.load %arg2[%c0, %c0_0, %c0_1] : memref<1x32x256xf32, #tpu.memory_space<vmem>>, vector<1x32x256xf32>
    %1 = vector.shape_cast %0 : vector<1x32x256xf32> to vector<32x256xf32>
    %c0_2 = arith.constant 0 : index
    %c0_3 = arith.constant 0 : index
    %2 = vector.load %arg4[%c0_2, %c0_3] : memref<1x32xf32, #tpu.memory_space<vmem>>, vector<1x32xf32>
    %cst = arith.constant dense<0.000000e+00> : vector<1x256xf32>
    %3 = tpu.matmul %2, %1, %cst {dimension_numbers = #tpu.dot_dimension_numbers<[1], [0], [0], [1], [0, 0, 1, 1], [], []>} : vector<1x32xf32>, vector<32x256xf32>, vector<1x256xf32> -> vector<1x256xf32>
    %c0_4 = arith.constant 0 : index
    %c0_5 = arith.constant 0 : index
    %4 = vector.load %arg5[%c0_4, %c0_5] : memref<1x1xf32, #tpu.memory_space<vmem>>, vector<1x1xf32>
    %5 = vector.broadcast %4 : vector<1x1xf32> to vector<1x256xf32>
    %6 = arith.addf %3, %5 : vector<1x256xf32>
    %7 = arith.negf %6 : vector<1x256xf32>
    %8 = math.exp %7 : vector<1x256xf32>
    %cst_6 = arith.constant 1.000000e+00 : f32
    %9 = vector.broadcast %cst_6 : f32 to vector<1x256xf32>
    %10 = arith.addf %9, %8 : vector<1x256xf32>
    %11 = arith.divf %9, %10 : vector<1x256xf32>
    %c0_7 = arith.constant 0 : index
    %c0_8 = arith.constant 0 : index
    %c0_9 = arith.constant 0 : index
    %12 = vector.load %arg3[%c0_7, %c0_8, %c0_9] : memref<1x32x1xf32, #tpu.memory_space<vmem>>, vector<1x32x1xf32>
    %13 = vector.shape_cast %12 : vector<1x32x1xf32> to vector<32x1xf32>
    %14 = vector.broadcast %13 : vector<32x1xf32> to vector<32x256xf32>
    %15 = vector.broadcast %11 : vector<1x256xf32> to vector<32x256xf32>
    %16 = arith.addf %14, %15 : vector<32x256xf32>
    %17 = arith.mulf %1, %16 : vector<32x256xf32>
    %c0_10 = arith.constant 0 : index
    %c0_11 = arith.constant 0 : index
    %c0_12 = arith.constant 0 : index
    %18 = vector.load %arg6[%c0_10, %c0_11, %c0_12] : memref<1x32x256xf32, #tpu.memory_space<vmem>>, vector<1x32x256xf32>
    %19 = vector.shape_cast %18 : vector<1x32x256xf32> to vector<32x256xf32>
    %20 = vector.shape_cast %17 : vector<32x256xf32> to vector<1x32x256xf32>
    tpu.vector_store %arg6[%c0_10, %c0_11, %c0_12], %20 {strides = array<i32>} : memref<1x32x256xf32, #tpu.memory_space<vmem>>, vector<1x32x256xf32>,
    return
  }
  func.func @transform_0(%arg0: i32, %arg1: i32) -> (i32, i32, i32) {
    %c0_i32 = arith.constant 0 : i32
    %c0_i32_0 = arith.constant 0 : i32
    return %arg0, %c0_i32, %arg1 : i32, i32, i32
  }
  func.func @transform_1(%arg0: i32, %arg1: i32) -> (i32, i32, i32) {
    %c0_i32 = arith.constant 0 : i32
    %c0_i32_0 = arith.constant 0 : i32
    %c0_i32_1 = arith.constant 0 : i32
    return %arg0, %c0_i32, %c0_i32_0 : i32, i32, i32
  }
  func.func @transform_2(%arg0: i32, %arg1: i32) -> (i32, i32) {
    %c0_i32 = arith.constant 0 : i32
    %c0_i32_0 = arith.constant 0 : i32
    %c0_i32_1 = arith.constant 0 : i32
    return %c0_i32, %c0_i32_0 : i32, i32
  }
  func.func @transform_3(%arg0: i32, %arg1: i32) -> (i32, i32) {
    %c0_i32 = arith.constant 0 : i32
    %c0_i32_0 = arith.constant 0 : i32
    %c0_i32_1 = arith.constant 0 : i32
    return %c0_i32, %c0_i32_0 : i32, i32
  }
  func.func @transform_4(%arg0: i32, %arg1: i32) -> (i32, i32, i32) {
    %c0_i32 = arith.constant 0 : i32
    %c0_i32_0 = arith.constant 0 : i32
    return %arg0, %c0_i32, %arg1 : i32, i32, i32
  }
}

</mosaic_0001>

<llo_original>
// kernel: scse_forward.2
$region0: #{scse_forward.2}
  #allocation0 [shape = 'u32[]', space=smem, size = 0x4, offset = 0x4, fixed_abs, tag = 'smem constant byte address 0x4 - core index']
  #allocation1 [shape = 'u32[144,128]{1,0:T(1,128)}', space=vmem, size = 0x12000, scoped, tag = 'internal scratch']
  #allocation2 [shape = 'f32[32,1]{1,0:T(8,128)}', space=vmem, size = 0x4000, scoped, tag = 'scratch operand']
  %s0 = inlined_call_operand.vmem [shape: f32[2,32,256], index: 0, kind: input, shape index: {}]
  %s1 = inlined_call_operand.vmem [shape: f32[2,32], index: 1, kind: input, shape index: {}]
  %s2 = inlined_call_operand.vmem [shape: f32[2,1], index: 2, kind: input, shape index: {}]
  %s3 = inlined_call_operand.vmem [shape: f32[32,2], index: 3, kind: input, shape index: {}]
  %s4 = inlined_call_operand.vmem [shape: f32[32,1], index: 4, kind: input, shape index: {}]
  %s5 = inlined_call_operand.vmem [shape: f32[2,32,1], index: 5, kind: output, shape index: {}]
  %s6 = sld [smem:[#allocation0]]
  $region61: #{scse_forward.2} parent=0
    _
  %s8 = ssub.s32 1, %s6
  %s9 = scalar_select 0, %s8, %s6
  loop: start=0, step=1, limit=4
  $region2: #{scse_forward.2} parent=0 // loop_pre_header
    _
  $region3: #{scse_forward.2} parent=0 // loop_header
    %s11 = sphi 0, %s15
    %p12 = scmp.ge.s32.totalorder %s11, 4
    %s18 = sphi 0, %s30
    %s19 = sphi 0, %s26
    %s20 = sphi 0, %s18
    %s21 = sphi 0, %s19
    %s22 = sphi 0, %s20
    %s23 = sphi 0, %s21
    %s35 = sphi 0, %s37
    %s38 = sphi 0, %s35
    %s39 = sphi 0, %s38
    %s55 = sphi 0, %s39
    %s59 = sphi 0, %s59
    %s61 = sphi 0, %s59
    %s62 = sphi 0, %s61
    %s76 = sphi 0, %s62
    %s80 = sphi 0, %s80
    %s82 = sphi 0, %s80
    %s83 = sphi 0, %s82
    %s97 = sphi 0, %s83
    %s101 = sphi 0, %s101
    %s103 = sphi 0, %s101
    %s104 = sphi 0, %s103
    %s118 = sphi 0, %s104
    %s122 = sphi 0, %s122
    %s124 = sphi 0, %s122
    %s125 = sphi 0, %s124
    %s139 = sphi 0, %s125
    %s145 = sphi 0, %s147
    %s148 = sphi 0, %s145
    %s149 = sphi 0, %s148
    %s165 = sphi 0, %s149
  $region4: #{scse_forward.2} parent=0 // loop_header_branch
    %14 = sbr.rel (%p12) target = $region8
  $region5: #{scse_forward.2} parent=0 // loop_body
    %s16 = ssub.s32 %s11, 1
    %s17 = ssub.s32 %s11, 2
    %s24 = sadd.s32 1, %s19
    %p25 = scmp.ge.s32.totalorder %s24, 1
    %s26 = scalar_select %p25, 0, %s24
    %s27 = sadd.s32 1, %s18
    %s28 = scalar_select %p25, %s27, %s18
    %p29 = scmp.ge.s32.totalorder %s28, 2
    %s30 = scalar_select %p29, 0, %s28
    %s31 = ssub.s32 %s18, %s30
    %s32 = ssub.s32 %s19, %s26
    %s33 = sor.u32 %s31, %s32
    %p34 = scmp.eq.s32.totalorder %s33, 0
    %s36 = sadd.s32 %s35, 1
    %s37 = scalar_select %p34, %s35, %s36
    %p40 = pneg %p34
    %p41 = scmp.eq.s32.totalorder %s11, 1
    %p42 = por %p40, %p41
    %p43 = scmp.ne.s32.totalorder %s35, %s38
    %p44 = scmp.eq.s32.totalorder %s11, 0
    %p45 = por %p43, %p44
    %p46 = scmp.ne.s32.totalorder %s35, %s38
    %p47 = scmp.eq.s32.totalorder %s16, 1
    %p48 = por %p46, %p47
    %p49 = scmp.ne.s32.totalorder %s38, %s39
    %p50 = scmp.eq.s32.totalorder %s16, 0
    %p51 = por %p49, %p50
    %p52 = scmp.ne.s32.totalorder %s38, %s39
    %p53 = scmp.eq.s32.totalorder %s17, 1
    %p54 = por %p52, %p53
    %p56 = scmp.ne.s32.totalorder %s39, %s55
    %p57 = scmp.eq.s32.totalorder %s17, 0
    %p58 = por %p56, %p57
    %s60 = sadd.s32 %s59, 1
    %p63 = scmp.eq.s32.totalorder %s11, 1
    %p64 = scmp.ne.s32.totalorder %s59, %s61
    %p65 = scmp.eq.s32.totalorder %s11, 0
    %p66 = por %p64, %p65
    %p67 = scmp.ne.s32.totalorder %s59, %s61
    %p68 = scmp.eq.s32.totalorder %s16, 1
    %p69 = por %p67, %p68
    %p70 = scmp.ne.s32.totalorder %s61, %s62
    %p71 = scmp.eq.s32.totalorder %s16, 0
    %p72 = por %p70, %p71
    %p73 = scmp.ne.s32.totalorder %s61, %s62
    %p74 = scmp.eq.s32.totalorder %s17, 1
    %p75 = por %p73, %p74
    %p77 = scmp.ne.s32.totalorder %s62, %s76
    %p78 = scmp.eq.s32.totalorder %s17, 0
    %p79 = por %p77, %p78
    %s81 = sadd.s32 %s80, 1
    %p84 = scmp.eq.s32.totalorder %s11, 1
    %p85 = scmp.ne.s32.totalorder %s80, %s82
    %p86 = scmp.eq.s32.totalorder %s11, 0
    %p87 = por %p85, %p86
    %p88 = scmp.ne.s32.totalorder %s80, %s82
    %p89 = scmp.eq.s32.totalorder %s16, 1
    %p90 = por %p88, %p89
    %p91 = scmp.ne.s32.totalorder %s82, %s83
    %p92 = scmp.eq.s32.totalorder %s16, 0
    %p93 = por %p91, %p92
    %p94 = scmp.ne.s32.totalorder %s82, %s83
    %p95 = scmp.eq.s32.totalorder %s17, 1
    %p96 = por %p94, %p95
    %p98 = scmp.ne.s32.totalorder %s83, %s97
    %p99 = scmp.eq.s32.totalorder %s17, 0
    %p100 = por %p98, %p99
    %s102 = sadd.s32 %s101, 1
    %p105 = scmp.eq.s32.totalorder %s11, 1
    %p106 = scmp.ne.s32.totalorder %s101, %s103
    %p107 = scmp.eq.s32.totalorder %s11, 0
    %p108 = por %p106, %p107
    %p109 = scmp.ne.s32.totalorder %s101, %s103
    %p110 = scmp.eq.s32.totalorder %s16, 1
    %p111 = por %p109, %p110
    %p112 = scmp.ne.s32.totalorder %s103, %s104
    %p113 = scmp.eq.s32.totalorder %s16, 0
    %p114 = por %p112, %p113
    %p115 = scmp.ne.s32.totalorder %s103, %s104
    %p116 = scmp.eq.s32.totalorder %s17, 1
    %p117 = por %p115, %p116
    %p119 = scmp.ne.s32.totalorder %s104, %s118
    %p120 = scmp.eq.s32.totalorder %s17, 0
    %p121 = por %p119, %p120
    %s123 = sadd.s32 %s122, 1
    %p126 = scmp.eq.s32.totalorder %s11, 1
    %p127 = scmp.ne.s32.totalorder %s122, %s124
    %p128 = scmp.eq.s32.totalorder %s11, 0
    %p129 = por %p127, %p128
    %p130 = scmp.ne.s32.totalorder %s122, %s124
    %p131 = scmp.eq.s32.totalorder %s16, 1
    %p132 = por %p130, %p131
    %p133 = scmp.ne.s32.totalorder %s124, %s125
    %p134 = scmp.eq.s32.totalorder %s16, 0
    %p135 = por %p133, %p134
    %p136 = scmp.ne.s32.totalorder %s124, %s125
    %p137 = scmp.eq.s32.totalorder %s17, 1
    %p138 = por %p136, %p137
    %p140 = scmp.ne.s32.totalorder %s125, %s139
    %p141 = scmp.eq.s32.totalorder %s17, 0
    %p142 = por %p140, %p141
    %s143 = ssub.s32 %s18, %s30
    %p144 = scmp.eq.s32.totalorder %s143, 0
    %s146 = sadd.s32 %s145, 1
    %s147 = scalar_select %p144, %s145, %s146
    %p150 = pneg %p144
    %p151 = scmp.eq.s32.totalorder %s11, 1
    %p152 = por %p150, %p151
    %p153 = scmp.ne.s32.totalorder %s145, %s148
    %p154 = scmp.eq.s32.totalorder %s11, 0
    %p155 = por %p153, %p154
    %p156 = scmp.ne.s32.totalorder %s145, %s148
    %p157 = scmp.eq.s32.totalorder %s16, 1
    %p158 = por %p156, %p157
    %p159 = scmp.ne.s32.totalorder %s148, %s149
    %p160 = scmp.eq.s32.totalorder %s16, 0
    %p161 = por %p159, %p160
    %p162 = scmp.ne.s32.totalorder %s148, %s149
    %p163 = scmp.eq.s32.totalorder %s17, 1
    %p164 = por %p162, %p163
    %p166 = scmp.ne.s32.totalorder %s149, %s165
    %p167 = scmp.eq.s32.totalorder %s17, 0
    %p168 = por %p166, %p167
    %p169 = scmp.le.s32.totalorder 1, %s11
    %p170 = scmp.lt.s32.totalorder %s11, 3
    %p171 = pnand %p169, %p170
    %p172 = pneg %p171
    // Predicated region
    $region9: #{scse_forward.2} parent=5 // pred_check
      _
    $region10: #{scse_forward.2} parent=5 // pred_check_branch
      %174 = sbr.rel (%p171) target = $region12
    $region11: #{scse_forward.2} parent=5 // pred_region
      %s175 = ssub.s32 %s11, 1
      // Predicated region
      $region13: #{scse_forward.2} parent=11 // pred_check
        %p176 = pneg %p72
      $region14: #{scse_forward.2} parent=11 // pred_check_branch
        %178 = sbr.rel (%p176) target = $region16
      $region15: #{scse_forward.2} parent=11 // pred_region
        _
      $region16: #{scse_forward.2} parent=11 // pred_fallthru
        _
      // Predicated region
      $region17: #{scse_forward.2} parent=11 // pred_check
        %p179 = pneg %p93
      $region18: #{scse_forward.2} parent=11 // pred_check_branch
        %181 = sbr.rel (%p179) target = $region20
      $region19: #{scse_forward.2} parent=11 // pred_region
        _
      $region20: #{scse_forward.2} parent=11 // pred_fallthru
        _
      // Predicated region
      $region21: #{scse_forward.2} parent=11 // pred_check
        %p182 = pneg %p114
      $region22: #{scse_forward.2} parent=11 // pred_check_branch
        %184 = sbr.rel (%p182) target = $region24
      $region23: #{scse_forward.2} parent=11 // pred_region
        _
      $region24: #{scse_forward.2} parent=11 // pred_fallthru
        _
      // Predicated region
      $region25: #{scse_forward.2} parent=11 // pred_check
        %p185 = pneg %p135
      $region26: #{scse_forward.2} parent=11 // pred_check_branch
        %187 = sbr.rel (%p185) target = $region28
      $region27: #{scse_forward.2} parent=11 // pred_region
        _
      $region28: #{scse_forward.2} parent=11 // pred_fallthru
        _
    $region12: #{scse_forward.2} parent=5 // pred_fallthru
      _
    %p188 = scmp.lt.s32.totalorder %s11, 2
    // Predicated region
    $region29: #{scse_forward.2} parent=5 // pred_check
      %p189 = pneg %p188
    $region30: #{scse_forward.2} parent=5 // pred_check_branch
      %191 = sbr.rel (%p189) target = $region32
    $region31: #{scse_forward.2} parent=5 // pred_region
      // Predicated region
      $region33: #{scse_forward.2} parent=31 // pred_check
        %p192 = pneg %p45
      $region34: #{scse_forward.2} parent=31 // pred_check_branch
        %194 = sbr.rel (%p192) target = $region36
      $region35: #{scse_forward.2} parent=31 // pred_region
        %s195 = smul.u32 2, %s19
        %p196 = scmp.lt.s32.totalorder %s18, 1
        %s197 = scalar_select %p196, %s18, 1
        %p198 = scmp.lt.s32.totalorder %s195, 1
        %s199 = scalar_select %p198, %s195, 1
        %s200 = smul.addr %s197, 8
        %s201 = sadd.s32 %s199, %s200
        %s202 = smul.addr %s201, 8
        %s203 = scalar_lea.vmem %s0, %s202
        %s204 = smul.u32 2, %s19
      $region36: #{scse_forward.2} parent=31 // pred_fallthru
        _
    $region32: #{scse_forward.2} parent=5 // pred_fallthru
      _
    %p205 = scmp.le.s32.totalorder 1, %s11
    %p206 = scmp.lt.s32.totalorder %s11, 3
    %p207 = pnand %p205, %p206
    %p208 = pneg %p207
    // Predicated region
    $region37: #{scse_forward.2} parent=5 // pred_check
      _
    $region38: #{scse_forward.2} parent=5 // pred_check_branch
      %210 = sbr.rel (%p207) target = $region40
    $region39: #{scse_forward.2} parent=5 // pred_region
      %s211 = ssub.s32 %s11, 1
      %s212 = smul.u32 2, %s21
      %p213 = scmp.lt.s32.totalorder %s20, 1
      %s214 = scalar_select %p213, %s20, 1
      %p215 = scmp.lt.s32.totalorder %s212, 1
      %s216 = scalar_select %p215, %s212, 1
      %s217 = smul.addr %s214, 8
      %s218 = sadd.s32 %s216, %s217
      %s219 = smul.addr %s218, 8
      %s220 = scalar_lea.vmem %s0, %s219
      %p221 = pneg %p51
      %p222 = pneg %p48
      %p223 = pneg %p72
      %p224 = pneg %p69
      %p225 = pneg %p93
      %p226 = pneg %p90
      %p227 = pneg %p114
      %p228 = pneg %p111
      %p229 = pneg %p135
      %p230 = pneg %p132
      %p231 = pneg %p161
      %p232 = pneg %p158
      %p233 = scmp.lt.s32.totalorder %s20, 1
      %s234 = scalar_select %p233, %s20, 1
      %s235 = smul.addr %s234, 4
      %s236 = smul.addr %s235, 8
      %s237 = scalar_lea.vmem %s5, %s236
      %s238 = smul.u32 2, %s21
      %p239 = scmp.lt.s32.totalorder %s20, 1
      %s240 = scalar_select %p239, %s20, 1
      %p241 = scmp.lt.s32.totalorder %s238, 1
      %s242 = scalar_select %p241, %s238, 1
      %s243 = smul.addr %s240, 8
      %s244 = sadd.s32 %s242, %s243
      %s245 = smul.addr %s244, 8
      %s246 = scalar_lea.vmem %s0, %s245
      %s247 = smul.u32 2, %s21
      %p248 = scmp.lt.s32.totalorder %s20, 1
      %s249 = scalar_select %p248, %s20, 1
      %s250 = smul.addr %s249, 4
      %s251 = smul.addr %s250, 8
      %s252 = scalar_lea.vmem %s5, %s251
      %p253 = scmp.eq.s32.totalorder %s21, 0
      // Predicated region
      $region41: #{scse_forward.2} parent=39 // pred_check
        %p254 = pneg %p253
      $region42: #{scse_forward.2} parent=39 // pred_check_branch
        %256 = sbr.rel (%p254) target = $region44
      $region43: #{scse_forward.2} parent=39 // pred_region
        %vm257 = vcmask 7168
        %258 = vst.msk [vmem:[#allocation2] sm:$0xff] %vm257, 0.0
        %259 = vst.msk [vmem:[#allocation2 + $0x8] sm:$0xff] %vm257, 0.0
        %260 = vst.msk [vmem:[#allocation2 + $0x10] sm:$0xff] %vm257, 0.0
        %261 = vst.msk [vmem:[#allocation2 + $0x18] sm:$0xff] %vm257, 0.0
      $region44: #{scse_forward.2} parent=39 // pred_fallthru
        _
      %s262 = smul.u32 %s21, 256
      %v263 = vlaneseq
      %v264 = vand.u32 %v263, 127
      %v265 = vadd.s32 %v264, 128
      %v266 = vstv %s262
      %v267 = vadd.s32 %v266, %v264
      %v268 = vadd.s32 %v266, %v265
      %vm269 = vcmp.lt.s32.totalorder %v267, 256
      %vm270 = vcmp.lt.s32.totalorder %v268, 256
      %v271 = vld [vmem:[%s246] sm:$0xff]
      %v272 = vld [vmem:[%s246 + $0x8] sm:$0xff]
      %v273 = vld [vmem:[%s246 + $0x10] sm:$0xff]
      %v274 = vld [vmem:[%s246 + $0x18] sm:$0xff]
      %v275 = vld [vmem:[%s246 + $0x20] sm:$0xff]
      %v276 = vld [vmem:[%s246 + $0x28] sm:$0xff]
      %v277 = vld [vmem:[%s246 + $0x30] sm:$0xff]
      %v278 = vld [vmem:[%s246 + $0x38] sm:$0xff]
      %v279 = vsel %vm269, %v271, 0.0
      %v280 = vsel %vm270, %v272, 0.0
      %v281 = vsel %vm269, %v273, 0.0
      %v282 = vsel %vm270, %v274, 0.0
      %v283 = vsel %vm269, %v275, 0.0
      %v284 = vsel %vm270, %v276, 0.0
      %v285 = vsel %vm269, %v277, 0.0
      %v286 = vsel %vm270, %v278, 0.0
      %v287 = vld [vmem:[#allocation2] sm:$0xff]
      %v288 = vld [vmem:[#allocation2 + $0x8] sm:$0xff]
      %v289 = vld [vmem:[#allocation2 + $0x10] sm:$0xff]
      %v290 = vld [vmem:[#allocation2 + $0x18] sm:$0xff]
      %v291 = vadd.f32 %v279, %v280
      %292 = vadd.xlane.f32.xlu0 %v291
      %v293 = vpop.xlane.xlu0 %292
      %v294 = vadd.f32 %v281, %v282
      %295 = vadd.xlane.f32.xlu0 %v294
      %v296 = vpop.xlane.xlu0 %295
      %v297 = vadd.f32 %v283, %v284
      %298 = vadd.xlane.f32.xlu0 %v297
      %v299 = vpop.xlane.xlu0 %298
      %v300 = vadd.f32 %v285, %v286
      %301 = vadd.xlane.f32.xlu0 %v300
      %v302 = vpop.xlane.xlu0 %301
      %v303 = vadd.f32 %v287, %v293
      %v304 = vadd.f32 %v288, %v296
      %v305 = vadd.f32 %v289, %v299
      %v306 = vadd.f32 %v290, %v302
      %vm307 = vcmask 7168
      %308 = vst.msk [vmem:[#allocation2] sm:$0xff] %vm307, %v303
      %309 = vst.msk [vmem:[#allocation2 + $0x8] sm:$0xff] %vm307, %v304
      %310 = vst.msk [vmem:[#allocation2 + $0x10] sm:$0xff] %vm307, %v305
      %311 = vst.msk [vmem:[#allocation2 + $0x18] sm:$0xff] %vm307, %v306
      // Predicated region
      $region45: #{scse_forward.2} parent=39 // pred_check
        %p312 = pneg %p253
      $region46: #{scse_forward.2} parent=39 // pred_check_branch
        %314 = sbr.rel (%p312) target = $region48
      $region47: #{scse_forward.2} parent=39 // pred_region
        %v315 = vld [vmem:[#allocation2] sm:$0xff]
        %v316 = vld [vmem:[#allocation2 + $0x8] sm:$0xff]
        %v317 = vld [vmem:[#allocation2 + $0x10] sm:$0xff]
        %v318 = vld [vmem:[#allocation2 + $0x18] sm:$0xff]
        %v319 = vmul.f32 %v315, 0.00390625
        %v320 = vmul.f32 %v316, 0.00390625
        %v321 = vmul.f32 %v317, 0.00390625
        %v322 = vmul.f32 %v318, 0.00390625
        %v323 = vld [vmem:[%s1] sm:$0x3]
        %v324 = vld [vmem:[%s2] sm:$0x3]
        %vm325 = vcmask 261120
        %v327 = vsel %vm325, %v323, 0
        %329 = vmatprep.subr.mxu0 0.0
        %330 = vmatpush1.msra.mxu0 0.0
        %331 = vmatprep.subr.mxu0 0.0
        %332 = vmatpush1.msra.mxu0 0.0
        %333 = vmatprep.subr.mxu0 0.0
        %334 = vmatpush1.msra.mxu0 0.0
        %335 = vmatprep.subr.mxu0 0.0
        %336 = vmatpush1.msra.mxu0 0.0
        %337 = vmatprep.subr.mxu0 0.0
        %338 = vmatpush1.msra.mxu0 0.0
        %339 = vmatprep.subr.mxu0 0.0
        %340 = vmatpush1.msra.mxu0 0.0
        %341 = vmatprep.subr.mxu0 0.0
        %342 = vmatpush1.msra.mxu0 0.0
        %343 = vmatprep.subr.mxu0 0.0
        %344 = vmatpush1.msra.mxu0 0.0
        %345 = vmatprep.subr.mxu0 0.0
        %346 = vmatpush1.msra.mxu0 0.0
        %347 = vmatprep.subr.mxu0 0.0
        %348 = vmatpush1.msra.mxu0 0.0
        %349 = vmatprep.subr.mxu0 0.0
        %350 = vmatpush1.msra.mxu0 0.0
        %351 = vmatprep.subr.mxu0 0.0
        %352 = vmatpush1.msra.mxu0 0.0
        %353 = vmatprep.subr.mxu0 0.0
        %354 = vmatpush1.msra.mxu0 %v322
        %355 = vmatprep.subr.mxu0 0.0
        %356 = vmatpush1.msra.mxu0 %v321
        %357 = vmatprep.subr.mxu0 0.0
        %358 = vmatpush1.msra.mxu0 %v320
        %359 = vmatprep.subr.mxu0 0.0
        %360 = vmatpush1.msra.mxu0 %v319
        %361 = vmatprep.subr.mxu0 0.0
        %362 = vmatpush2.msra.mxu0 0.0
        %363 = vmatprep.subr.mxu0 0.0
        %364 = vmatpush2.msra.mxu0 0.0
        %365 = vmatprep.subr.mxu0 0.0
        %366 = vmatpush2.msra.mxu0 0.0
        %367 = vmatprep.subr.mxu0 0.0
        %368 = vmatpush2.msra.mxu0 0.0
        %369 = vmatprep.subr.mxu0 0.0
        %370 = vmatpush2.msra.mxu0 0.0
        %371 = vmatprep.subr.mxu0 0.0
        %372 = vmatpush2.msra.mxu0 0.0
        %373 = vmatprep.subr.mxu0 0.0
        %374 = vmatpush2.msra.mxu0 0.0
        %375 = vmatprep.subr.mxu0 0.0
        %376 = vmatpush2.msra.mxu0 0.0
        %377 = vmatprep.subr.mxu0 0.0
        %378 = vmatpush2.msra.mxu0 0.0
        %379 = vmatprep.subr.mxu0 0.0
        %380 = vmatpush2.msra.mxu0 0.0
        %381 = vmatprep.subr.mxu0 0.0
        %382 = vmatpush2.msra.mxu0 0.0
        %383 = vmatprep.subr.mxu0 0.0
        %384 = vmatpush2.msra.mxu0 0.0
        %385 = vmatprep.subr.mxu0 0.0
        %386 = vmatpush2.msra.mxu0 0.0
        %387 = vmatprep.subr.mxu0 0.0
        %388 = vmatpush2.msra.mxu0 0.0
        %389 = vmatprep.subr.mxu0 0.0
        %390 = vmatpush2.msra.mxu0 0.0
        %391 = vmatprep.subr.mxu0 0.0
        %392 = vmatpush2.msra.mxu0 0.0
        %393 = vmatprep.mubr.f32.mxu0 0.0
        %394 = vmatmul.mubr.f32.gmra.mxu0 %v327
        %v395 = vpop.f32.mrf.mxu0
        %v396 = vadd.f32 %v324, %v395
        %v397 = vpop.f32.mrf.mxu0
        %398 = vdwg.mxu0
        %v399 = vmax.f32 %v396, 0.0
        %v400 = vld [vmem:[%s3] sm:$0xff]
        %v401 = vld [vmem:[%s3 + $0x8] sm:$0xff]
        %v402 = vld [vmem:[%s3 + $0x10] sm:$0xff]
        %v403 = vld [vmem:[%s3 + $0x18] sm:$0xff]
        %v404 = vld [vmem:[%s4] sm:$0xff]
        %v405 = vld [vmem:[%s4 + $0x8] sm:$0xff]
        %v406 = vld [vmem:[%s4 + $0x10] sm:$0xff]
        %v407 = vld [vmem:[%s4 + $0x18] sm:$0xff]
        %vm408 = vcmask 15360
        %v410 = vsel %vm408, %v400, 0
        %v413 = vsel %vm408, %v401, 0
        %v416 = vsel %vm408, %v402, 0
        %v419 = vsel %vm408, %v403, 0
        %vm421 = vcmask 1041408
        %v423 = vsel %vm421, %v399, 0
        %425 = vmatprep.subr.mxu0 0.0
        %426 = vmatpush1.msra.mxu0 0.0
        %427 = vmatprep.subr.mxu0 0.0
        %428 = vmatpush1.msra.mxu0 0.0
        %429 = vmatprep.subr.mxu0 0.0
        %430 = vmatpush1.msra.mxu0 0.0
        %431 = vmatprep.subr.mxu0 0.0
        %432 = vmatpush1.msra.mxu0 0.0
        %433 = vmatprep.subr.mxu0 0.0
        %434 = vmatpush1.msra.mxu0 0.0
        %435 = vmatprep.subr.mxu0 0.0
        %436 = vmatpush1.msra.mxu0 0.0
        %437 = vmatprep.subr.mxu0 0.0
        %438 = vmatpush1.msra.mxu0 0.0
        %439 = vmatprep.subr.mxu0 0.0
        %440 = vmatpush1.msra.mxu0 0.0
        %441 = vmatprep.subr.mxu0 0.0
        %442 = vmatpush1.msra.mxu0 0.0
        %443 = vmatprep.subr.mxu0 0.0
        %444 = vmatpush1.msra.mxu0 0.0
        %445 = vmatprep.subr.mxu0 0.0
        %446 = vmatpush1.msra.mxu0 0.0
        %447 = vmatprep.subr.mxu0 0.0
        %448 = vmatpush1.msra.mxu0 0.0
        %449 = vmatprep.subr.mxu0 0.0
        %450 = vmatpush1.msra.mxu0 0.0
        %451 = vmatprep.subr.mxu0 0.0
        %452 = vmatpush1.msra.mxu0 0.0
        %453 = vmatprep.subr.mxu0 0.0
        %454 = vmatpush1.msra.mxu0 0.0
        %455 = vmatprep.subr.mxu0 0.0
        %456 = vmatpush1.msra.mxu0 %v423
        %457 = vmatprep.subr.mxu0 0.0
        %458 = vmatpush2.msra.mxu0 0.0
        %459 = vmatprep.subr.mxu0 0.0
        %460 = vmatpush2.msra.mxu0 0.0
        %461 = vmatprep.subr.mxu0 0.0
        %462 = vmatpush2.msra.mxu0 0.0
        %463 = vmatprep.subr.mxu0 0.0
        %464 = vmatpush2.msra.mxu0 0.0
        %465 = vmatprep.subr.mxu0 0.0
        %466 = vmatpush2.msra.mxu0 0.0
        %467 = vmatprep.subr.mxu0 0.0
        %468 = vmatpush2.msra.mxu0 0.0
        %469 = vmatprep.subr.mxu0 0.0
        %470 = vmatpush2.msra.mxu0 0.0
        %471 = vmatprep.subr.mxu0 0.0
        %472 = vmatpush2.msra.mxu0 0.0
        %473 = vmatprep.subr.mxu0 0.0
        %474 = vmatpush2.msra.mxu0 0.0
        %475 = vmatprep.subr.mxu0 0.0
        %476 = vmatpush2.msra.mxu0 0.0
        %477 = vmatprep.subr.mxu0 0.0
        %478 = vmatpush2.msra.mxu0 0.0
        %479 = vmatprep.subr.mxu0 0.0
        %480 = vmatpush2.msra.mxu0 0.0
        %481 = vmatprep.subr.mxu0 0.0
        %482 = vmatpush2.msra.mxu0 0.0
        %483 = vmatprep.subr.mxu0 0.0
        %484 = vmatpush2.msra.mxu0 0.0
        %485 = vmatprep.subr.mxu0 0.0
        %486 = vmatpush2.msra.mxu0 0.0
        %487 = vmatprep.subr.mxu0 0.0
        %488 = vmatpush2.msra.mxu0 0.0
        %489 = vmatprep.mubr.f32.mxu0 0.0
        %490 = vmatmul.mubr.f32.gmra.mxu0 %v410
        %v491 = vpop.f32.mrf.mxu0
        %v492 = vadd.f32 %v404, %v491
        %v493 = vpop.f32.mrf.mxu0
        %494 = vmatprep.mubr.f32.mxu0 0.0
        %495 = vmatmul.mubr.f32.gmra.mxu0 %v413
        %v496 = vpop.f32.mrf.mxu0
        %v497 = vadd.f32 %v405, %v496
        %v498 = vpop.f32.mrf.mxu0
        %499 = vmatprep.mubr.f32.mxu0 0.0
        %500 = vmatmul.mubr.f32.gmra.mxu0 %v416
        %v501 = vpop.f32.mrf.mxu0
        %v502 = vadd.f32 %v406, %v501
        %v503 = vpop.f32.mrf.mxu0
        %504 = vmatprep.mubr.f32.mxu0 0.0
        %505 = vmatmul.mubr.f32.gmra.mxu0 %v419
        %v506 = vpop.f32.mrf.mxu0
        %v507 = vadd.f32 %v407, %v506
        %v508 = vpop.f32.mrf.mxu0
        %509 = vdwg.mxu0
        %v510 = vxor.u32 %v492, 2147483648
        %v511 = vxor.u32 %v497, 2147483648
        %v512 = vxor.u32 %v502, 2147483648
        %v513 = vxor.u32 %v507, 2147483648
        %v514 = vmul.f32 %v510, 1.442695
        %v515 = vpow.pop %v514
        %v516 = vmul.f32 %v511, 1.442695
        %v517 = vpow.pop %v516
        %v518 = vmul.f32 %v512, 1.442695
        %v519 = vpow.pop %v518
        %v520 = vmul.f32 %v513, 1.442695
        %v521 = vpow.pop %v520
        %v522 = vadd.f32 %v515, 1.0
        %v523 = vadd.f32 %v517, 1.0
        %v524 = vadd.f32 %v519, 1.0
        %v525 = vadd.f32 %v521, 1.0
        %v526 = vrcp.pop %v522
        %v527 = vmul.f32 1.0, %v526
        %v528 = vrcp.pop %v523
        %v529 = vmul.f32 1.0, %v528
        %v530 = vrcp.pop %v524
        %v531 = vmul.f32 1.0, %v530
        %v532 = vrcp.pop %v525
        %v533 = vmul.f32 1.0, %v532
        %534 = vst.msk [vmem:[%s252] sm:$0xff] %vm307, %v527
        %535 = vst.msk [vmem:[%s252 + $0x8] sm:$0xff] %vm307, %v529
        %536 = vst.msk [vmem:[%s252 + $0x10] sm:$0xff] %vm307, %v531
        %537 = vst.msk [vmem:[%s252 + $0x18] sm:$0xff] %vm307, %v533
      $region48: #{scse_forward.2} parent=39 // pred_fallthru
        _
      %p538 = scmp.lt.s32.totalorder %s20, 1
      %s539 = scalar_select %p538, %s20, 1
      %s540 = smul.addr %s539, 4
      %s541 = smul.addr %s540, 8
      %s542 = scalar_lea.vmem %s5, %s541
      // Predicated region
      $region49: #{scse_forward.2} parent=39 // pred_check
        %p543 = pneg %p158
      $region50: #{scse_forward.2} parent=39 // pred_check_branch
        %545 = sbr.rel (%p543) target = $region52
      $region51: #{scse_forward.2} parent=39 // pred_region
        _
      $region52: #{scse_forward.2} parent=39 // pred_fallthru
        _
    $region40: #{scse_forward.2} parent=5 // pred_fallthru
      _
    %p546 = scmp.le.s32.totalorder 2, %s11
    // Predicated region
    $region53: #{scse_forward.2} parent=5 // pred_check
      %p547 = pneg %p546
    $region54: #{scse_forward.2} parent=5 // pred_check_branch
      %549 = sbr.rel (%p547) target = $region56
    $region55: #{scse_forward.2} parent=5 // pred_region
      %s550 = ssub.s32 %s11, 2
      // Predicated region
      $region57: #{scse_forward.2} parent=55 // pred_check
        %p551 = pneg %p164
      $region58: #{scse_forward.2} parent=55 // pred_check_branch
        %553 = sbr.rel (%p551) target = $region60
      $region59: #{scse_forward.2} parent=55 // pred_region
        %p554 = scmp.lt.s32.totalorder %s22, 1
        %s555 = scalar_select %p554, %s22, 1
        %s556 = smul.addr %s555, 4
        %s557 = smul.addr %s556, 8
        %s558 = scalar_lea.vmem %s5, %s557
      $region60: #{scse_forward.2} parent=55 // pred_fallthru
        _
    $region56: #{scse_forward.2} parent=5 // pred_fallthru
      _
  $region6: #{scse_forward.2} parent=0 // loop_footer
    %s15 = sadd.s32 1, %s11
  $region7: #{scse_forward.2} parent=0 // loop_footer_branch
    %10 = sbr.rel target = $region3
  $region8: #{scse_forward.2} parent=0 // loop_exit
    _

// kernel: scse_forward.3
$region0: #{scse_forward.3}
  #allocation0 [shape = 'u32[]', space=smem, size = 0x4, offset = 0x4, fixed_abs, tag = 'smem constant byte address 0x4 - core index']
  #allocation1 [shape = 'u32[144,128]{1,0:T(1,128)}', space=vmem, size = 0x12000, scoped, tag = 'internal scratch']
  #allocation2 [shape = 'f32[1,1]{1,0:T(1,128)S(1)}', space=vmem, size = 0x200, scoped, tag = 'scoped memory for scse_forward.3']
  %s0 = inlined_call_operand.vmem [shape: f32[2,32,256], index: 0, kind: input, shape index: {}]
  %s1 = inlined_call_operand.vmem [shape: f32[2,32,1], index: 1, kind: input, shape index: {}]
  %s2 = inlined_call_operand.vmem [shape: f32[1,32], index: 2, kind: input, shape index: {}]
  %s3 = inlined_call_operand.<no memory space> [shape: f32[1,1], index: 3, kind: input, shape index: {}]
  %s4 = inlined_call_operand.vmem [shape: f32[2,32,256], index: 4, kind: output, shape index: {}]
  %s5 = sld [smem:[#allocation0]]
  $region49: #{scse_forward.3} parent=0
    _
  %s7 = ssub.s32 1, %s5
  %s8 = scalar_select 0, %s7, %s5
  %v9 = vstv %s3
  %10 = vst [vmem:[#allocation2] sm:$0x1] %v9
  loop: start=0, step=1, limit=4
  $region2: #{scse_forward.3} parent=0 // loop_pre_header
    _
  $region3: #{scse_forward.3} parent=0 // loop_header
    %s12 = sphi 0, %s16
    %p13 = scmp.ge.s32.totalorder %s12, 4
    %s19 = sphi 0, %s31
    %s20 = sphi 0, %s27
    %s21 = sphi 0, %s19
    %s22 = sphi 0, %s20
    %s23 = sphi 0, %s21
    %s24 = sphi 0, %s22
    %s36 = sphi 0, %s38
    %s39 = sphi 0, %s36
    %s40 = sphi 0, %s39
    %s56 = sphi 0, %s40
    %s62 = sphi 0, %s64
    %s65 = sphi 0, %s62
    %s66 = sphi 0, %s65
    %s82 = sphi 0, %s66
    %s86 = sphi 0, %s86
    %s88 = sphi 0, %s86
    %s89 = sphi 0, %s88
    %s103 = sphi 0, %s89
    %s107 = sphi 0, %s107
    %s109 = sphi 0, %s107
    %s110 = sphi 0, %s109
    %s124 = sphi 0, %s110
    %s132 = sphi 0, %s134
    %s135 = sphi 0, %s132
    %s136 = sphi 0, %s135
    %s152 = sphi 0, %s136
  $region4: #{scse_forward.3} parent=0 // loop_header_branch
    %15 = sbr.rel (%p13) target = $region8
  $region5: #{scse_forward.3} parent=0 // loop_body
    %s17 = ssub.s32 %s12, 1
    %s18 = ssub.s32 %s12, 2
    %s25 = sadd.s32 1, %s20
    %p26 = scmp.ge.s32.totalorder %s25, 1
    %s27 = scalar_select %p26, 0, %s25
    %s28 = sadd.s32 1, %s19
    %s29 = scalar_select %p26, %s28, %s19
    %p30 = scmp.ge.s32.totalorder %s29, 2
    %s31 = scalar_select %p30, 0, %s29
    %s32 = ssub.s32 %s19, %s31
    %s33 = ssub.s32 %s20, %s27
    %s34 = sor.u32 %s32, %s33
    %p35 = scmp.eq.s32.totalorder %s34, 0
    %s37 = sadd.s32 %s36, 1
    %s38 = scalar_select %p35, %s36, %s37
    %p41 = pneg %p35
    %p42 = scmp.eq.s32.totalorder %s12, 1
    %p43 = por %p41, %p42
    %p44 = scmp.ne.s32.totalorder %s36, %s39
    %p45 = scmp.eq.s32.totalorder %s12, 0
    %p46 = por %p44, %p45
    %p47 = scmp.ne.s32.totalorder %s36, %s39
    %p48 = scmp.eq.s32.totalorder %s17, 1
    %p49 = por %p47, %p48
    %p50 = scmp.ne.s32.totalorder %s39, %s40
    %p51 = scmp.eq.s32.totalorder %s17, 0
    %p52 = por %p50, %p51
    %p53 = scmp.ne.s32.totalorder %s39, %s40
    %p54 = scmp.eq.s32.totalorder %s18, 1
    %p55 = por %p53, %p54
    %p57 = scmp.ne.s32.totalorder %s40, %s56
    %p58 = scmp.eq.s32.totalorder %s18, 0
    %p59 = por %p57, %p58
    %s60 = ssub.s32 %s19, %s31
    %p61 = scmp.eq.s32.totalorder %s60, 0
    %s63 = sadd.s32 %s62, 1
    %s64 = scalar_select %p61, %s62, %s63
    %p67 = pneg %p61
    %p68 = scmp.eq.s32.totalorder %s12, 1
    %p69 = por %p67, %p68
    %p70 = scmp.ne.s32.totalorder %s62, %s65
    %p71 = scmp.eq.s32.totalorder %s12, 0
    %p72 = por %p70, %p71
    %p73 = scmp.ne.s32.totalorder %s62, %s65
    %p74 = scmp.eq.s32.totalorder %s17, 1
    %p75 = por %p73, %p74
    %p76 = scmp.ne.s32.totalorder %s65, %s66
    %p77 = scmp.eq.s32.totalorder %s17, 0
    %p78 = por %p76, %p77
    %p79 = scmp.ne.s32.totalorder %s65, %s66
    %p80 = scmp.eq.s32.totalorder %s18, 1
    %p81 = por %p79, %p80
    %p83 = scmp.ne.s32.totalorder %s66, %s82
    %p84 = scmp.eq.s32.totalorder %s18, 0
    %p85 = por %p83, %p84
    %s87 = sadd.s32 %s86, 1
    %p90 = scmp.eq.s32.totalorder %s12, 1
    %p91 = scmp.ne.s32.totalorder %s86, %s88
    %p92 = scmp.eq.s32.totalorder %s12, 0
    %p93 = por %p91, %p92
    %p94 = scmp.ne.s32.totalorder %s86, %s88
    %p95 = scmp.eq.s32.totalorder %s17, 1
    %p96 = por %p94, %p95
    %p97 = scmp.ne.s32.totalorder %s88, %s89
    %p98 = scmp.eq.s32.totalorder %s17, 0
    %p99 = por %p97, %p98
    %p100 = scmp.ne.s32.totalorder %s88, %s89
    %p101 = scmp.eq.s32.totalorder %s18, 1
    %p102 = por %p100, %p101
    %p104 = scmp.ne.s32.totalorder %s89, %s103
    %p105 = scmp.eq.s32.totalorder %s18, 0
    %p106 = por %p104, %p105
    %s108 = sadd.s32 %s107, 1
    %p111 = scmp.eq.s32.totalorder %s12, 1
    %p112 = scmp.ne.s32.totalorder %s107, %s109
    %p113 = scmp.eq.s32.totalorder %s12, 0
    %p114 = por %p112, %p113
    %p115 = scmp.ne.s32.totalorder %s107, %s109
    %p116 = scmp.eq.s32.totalorder %s17, 1
    %p117 = por %p115, %p116
    %p118 = scmp.ne.s32.totalorder %s109, %s110
    %p119 = scmp.eq.s32.totalorder %s17, 0
    %p120 = por %p118, %p119
    %p121 = scmp.ne.s32.totalorder %s109, %s110
    %p122 = scmp.eq.s32.totalorder %s18, 1
    %p123 = por %p121, %p122
    %p125 = scmp.ne.s32.totalorder %s110, %s124
    %p126 = scmp.eq.s32.totalorder %s18, 0
    %p127 = por %p125, %p126
    %s128 = ssub.s32 %s19, %s31
    %s129 = ssub.s32 %s20, %s27
    %s130 = sor.u32 %s128, %s129
    %p131 = scmp.eq.s32.totalorder %s130, 0
    %s133 = sadd.s32 %s132, 1
    %s134 = scalar_select %p131, %s132, %s133
    %p137 = pneg %p131
    %p138 = scmp.eq.s32.totalorder %s12, 1
    %p139 = por %p137, %p138
    %p140 = scmp.ne.s32.totalorder %s132, %s135
    %p141 = scmp.eq.s32.totalorder %s12, 0
    %p142 = por %p140, %p141
    %p143 = scmp.ne.s32.totalorder %s132, %s135
    %p144 = scmp.eq.s32.totalorder %s17, 1
    %p145 = por %p143, %p144
    %p146 = scmp.ne.s32.totalorder %s135, %s136
    %p147 = scmp.eq.s32.totalorder %s17, 0
    %p148 = por %p146, %p147
    %p149 = scmp.ne.s32.totalorder %s135, %s136
    %p150 = scmp.eq.s32.totalorder %s18, 1
    %p151 = por %p149, %p150
    %p153 = scmp.ne.s32.totalorder %s136, %s152
    %p154 = scmp.eq.s32.totalorder %s18, 0
    %p155 = por %p153, %p154
    %p156 = scmp.le.s32.totalorder 1, %s12
    %p157 = scmp.lt.s32.totalorder %s12, 3
    %p158 = pnand %p156, %p157
    %p159 = pneg %p158
    // Predicated region
    $region9: #{scse_forward.3} parent=5 // pred_check
      _
    $region10: #{scse_forward.3} parent=5 // pred_check_branch
      %161 = sbr.rel (%p158) target = $region12
    $region11: #{scse_forward.3} parent=5 // pred_region
      %s162 = ssub.s32 %s12, 1
      // Predicated region
      $region13: #{scse_forward.3} parent=11 // pred_check
        %p163 = pneg %p99
      $region14: #{scse_forward.3} parent=11 // pred_check_branch
        %165 = sbr.rel (%p163) target = $region16
      $region15: #{scse_forward.3} parent=11 // pred_region
        _
      $region16: #{scse_forward.3} parent=11 // pred_fallthru
        _
      // Predicated region
      $region17: #{scse_forward.3} parent=11 // pred_check
        %p166 = pneg %p120
      $region18: #{scse_forward.3} parent=11 // pred_check_branch
        %168 = sbr.rel (%p166) target = $region20
      $region19: #{scse_forward.3} parent=11 // pred_region
        _
      $region20: #{scse_forward.3} parent=11 // pred_fallthru
        _
    $region12: #{scse_forward.3} parent=5 // pred_fallthru
      _
    %p169 = scmp.lt.s32.totalorder %s12, 2
    // Predicated region
    $region21: #{scse_forward.3} parent=5 // pred_check
      %p170 = pneg %p169
    $region22: #{scse_forward.3} parent=5 // pred_check_branch
      %172 = sbr.rel (%p170) target = $region24
    $region23: #{scse_forward.3} parent=5 // pred_region
      // Predicated region
      $region25: #{scse_forward.3} parent=23 // pred_check
        %p173 = pneg %p46
      $region26: #{scse_forward.3} parent=23 // pred_check_branch
        %175 = sbr.rel (%p173) target = $region28
      $region27: #{scse_forward.3} parent=23 // pred_region
        %s176 = smul.u32 2, %s20
        %p177 = scmp.lt.s32.totalorder %s19, 1
        %s178 = scalar_select %p177, %s19, 1
        %p179 = scmp.lt.s32.totalorder %s176, 1
        %s180 = scalar_select %p179, %s176, 1
        %s181 = smul.addr %s178, 8
        %s182 = sadd.s32 %s180, %s181
        %s183 = smul.addr %s182, 8
        %s184 = scalar_lea.vmem %s0, %s183
        %s185 = smul.u32 2, %s20
      $region28: #{scse_forward.3} parent=23 // pred_fallthru
        _
      // Predicated region
      $region29: #{scse_forward.3} parent=23 // pred_check
        %p186 = pneg %p72
      $region30: #{scse_forward.3} parent=23 // pred_check_branch
        %188 = sbr.rel (%p186) target = $region32
      $region31: #{scse_forward.3} parent=23 // pred_region
        %p189 = scmp.lt.s32.totalorder %s19, 1
        %s190 = scalar_select %p189, %s19, 1
        %s191 = smul.addr %s190, 4
        %s192 = smul.addr %s191, 8
        %s193 = scalar_lea.vmem %s1, %s192
      $region32: #{scse_forward.3} parent=23 // pred_fallthru
        _
    $region24: #{scse_forward.3} parent=5 // pred_fallthru
      _
    %p194 = scmp.le.s32.totalorder 1, %s12
    %p195 = scmp.lt.s32.totalorder %s12, 3
    %p196 = pnand %p194, %p195
    %p197 = pneg %p196
    // Predicated region
    $region33: #{scse_forward.3} parent=5 // pred_check
      _
    $region34: #{scse_forward.3} parent=5 // pred_check_branch
      %199 = sbr.rel (%p196) target = $region36
    $region35: #{scse_forward.3} parent=5 // pred_region
      %s200 = ssub.s32 %s12, 1
      %s201 = smul.u32 2, %s22
      %p202 = scmp.lt.s32.totalorder %s21, 1
      %s203 = scalar_select %p202, %s21, 1
      %p204 = scmp.lt.s32.totalorder %s201, 1
      %s205 = scalar_select %p204, %s201, 1
      %s206 = smul.addr %s203, 8
      %s207 = sadd.s32 %s205, %s206
      %s208 = smul.addr %s207, 8
      %s209 = scalar_lea.vmem %s0, %s208
      %p210 = pneg %p52
      %p211 = pneg %p49
      %p212 = scmp.lt.s32.totalorder %s21, 1
      %s213 = scalar_select %p212, %s21, 1
      %s214 = smul.addr %s213, 4
      %s215 = smul.addr %s214, 8
      %s216 = scalar_lea.vmem %s1, %s215
      %p217 = pneg %p78
      %p218 = pneg %p75
      %p219 = pneg %p99
      %p220 = pneg %p96
      %p221 = pneg %p120
      %p222 = pneg %p117
      %p223 = pneg %p148
      %p224 = pneg %p145
      %s225 = smul.u32 2, %s22
      %p226 = scmp.lt.s32.totalorder %s21, 1
      %s227 = scalar_select %p226, %s21, 1
      %p228 = scmp.lt.s32.totalorder %s225, 1
      %s229 = scalar_select %p228, %s225, 1
      %s230 = smul.addr %s227, 8
      %s231 = sadd.s32 %s229, %s230
      %s232 = smul.addr %s231, 8
      %s233 = scalar_lea.vmem %s4, %s232
      %s234 = smul.u32 2, %s22
      %p235 = scmp.lt.s32.totalorder %s21, 1
      %s236 = scalar_select %p235, %s21, 1
      %p237 = scmp.lt.s32.totalorder %s234, 1
      %s238 = scalar_select %p237, %s234, 1
      %s239 = smul.addr %s236, 8
      %s240 = sadd.s32 %s238, %s239
      %s241 = smul.addr %s240, 8
      %s242 = scalar_lea.vmem %s0, %s241
      %s243 = smul.u32 2, %s22
      %p244 = scmp.lt.s32.totalorder %s21, 1
      %s245 = scalar_select %p244, %s21, 1
      %s246 = smul.addr %s245, 4
      %s247 = smul.addr %s246, 8
      %s248 = scalar_lea.vmem %s1, %s247
      %s249 = smul.u32 2, %s22
      %p250 = scmp.lt.s32.totalorder %s21, 1
      %s251 = scalar_select %p250, %s21, 1
      %p252 = scmp.lt.s32.totalorder %s249, 1
      %s253 = scalar_select %p252, %s249, 1
      %s254 = smul.addr %s251, 8
      %s255 = sadd.s32 %s253, %s254
      %s256 = smul.addr %s255, 8
      %s257 = scalar_lea.vmem %s4, %s256
      %s258 = smul.u32 2, %s22
      %v259 = vld [vmem:[%s242] sm:$0xff]
      %v260 = vld [vmem:[%s242 + $0x8] sm:$0xff]
      %v261 = vld [vmem:[%s242 + $0x10] sm:$0xff]
      %v262 = vld [vmem:[%s242 + $0x18] sm:$0xff]
      %v263 = vld [vmem:[%s242 + $0x20] sm:$0xff]
      %v264 = vld [vmem:[%s242 + $0x28] sm:$0xff]
      %v265 = vld [vmem:[%s242 + $0x30] sm:$0xff]
      %v266 = vld [vmem:[%s242 + $0x38] sm:$0xff]
      %v267 = vld [vmem:[%s2] sm:$0x1]
      %v268 = vld [vmem:[#allocation2] sm:$0x1]
      %270 = vset.pattern.permute.xlu0 0
      %271 = vperm.xlu0 %270, %v268
      %v272 = vpop.permute.xlu0 %271
      %v274 = vlaneseq
      %v275 = vshrl.u32 %v274, 7
      %v276 = vsub.s32 0, %v275
      %v277 = vrot.slane %v272, %v276
      %vm278 = vcmask 261120
      %v280 = vsel %vm278, %v267, 0
      %282 = vmatprep.subr.mxu0 0.0
      %283 = vmatpush1.msra.mxu0 0.0
      %284 = vmatprep.subr.mxu0 0.0
      %285 = vmatpush1.msra.mxu0 0.0
      %286 = vmatprep.subr.mxu0 0.0
      %287 = vmatpush1.msra.mxu0 0.0
      %288 = vmatprep.subr.mxu0 0.0
      %289 = vmatpush1.msra.mxu0 0.0
      %290 = vmatprep.subr.mxu0 0.0
      %291 = vmatpush1.msra.mxu0 0.0
      %292 = vmatprep.subr.mxu0 0.0
      %293 = vmatpush1.msra.mxu0 0.0
      %294 = vmatprep.subr.mxu0 0.0
      %295 = vmatpush1.msra.mxu0 0.0
      %296 = vmatprep.subr.mxu0 0.0
      %297 = vmatpush1.msra.mxu0 0.0
      %298 = vmatprep.subr.mxu0 0.0
      %299 = vmatpush1.msra.mxu0 0.0
      %300 = vmatprep.subr.mxu0 0.0
      %301 = vmatpush1.msra.mxu0 0.0
      %302 = vmatprep.subr.mxu0 0.0
      %303 = vmatpush1.msra.mxu0 0.0
      %304 = vmatprep.subr.mxu0 0.0
      %305 = vmatpush1.msra.mxu0 0.0
      %306 = vmatprep.subr.mxu0 %v266
      %307 = vmatpush1.msra.mxu0 %v265
      %308 = vmatprep.subr.mxu0 %v264
      %309 = vmatpush1.msra.mxu0 %v263
      %310 = vmatprep.subr.mxu0 %v262
      %311 = vmatpush1.msra.mxu0 %v261
      %312 = vmatprep.subr.mxu0 %v260
      %313 = vmatpush1.msra.mxu0 %v259
      %314 = vmatprep.subr.mxu0 0.0
      %315 = vmatpush2.msra.mxu0 0.0
      %316 = vmatprep.subr.mxu0 0.0
      %317 = vmatpush2.msra.mxu0 0.0
      %318 = vmatprep.subr.mxu0 0.0
      %319 = vmatpush2.msra.mxu0 0.0
      %320 = vmatprep.subr.mxu0 0.0
      %321 = vmatpush2.msra.mxu0 0.0
      %322 = vmatprep.subr.mxu0 0.0
      %323 = vmatpush2.msra.mxu0 0.0
      %324 = vmatprep.subr.mxu0 0.0
      %325 = vmatpush2.msra.mxu0 0.0
      %326 = vmatprep.subr.mxu0 0.0
      %327 = vmatpush2.msra.mxu0 0.0
      %328 = vmatprep.subr.mxu0 0.0
      %329 = vmatpush2.msra.mxu0 0.0
      %330 = vmatprep.subr.mxu0 0.0
      %331 = vmatpush2.msra.mxu0 0.0
      %332 = vmatprep.subr.mxu0 0.0
      %333 = vmatpush2.msra.mxu0 0.0
      %334 = vmatprep.subr.mxu0 0.0
      %335 = vmatpush2.msra.mxu0 0.0
      %336 = vmatprep.subr.mxu0 0.0
      %337 = vmatpush2.msra.mxu0 0.0
      %338 = vmatprep.subr.mxu0 0.0
      %339 = vmatpush2.msra.mxu0 0.0
      %340 = vmatprep.subr.mxu0 0.0
      %341 = vmatpush2.msra.mxu0 0.0
      %342 = vmatprep.subr.mxu0 0.0
      %343 = vmatpush2.msra.mxu0 0.0
      %344 = vmatprep.subr.mxu0 0.0
      %345 = vmatpush2.msra.mxu0 0.0
      %346 = vmatprep.mubr.f32.mxu0 0.0
      %347 = vmatmul.mubr.f32.gmra.mxu0 %v280
      %v348 = vpop.f32.mrf.mxu0
      %v349 = vadd.f32 %v277, %v348
      %v350 = vpop.f32.mrf.mxu0
      %v351 = vadd.f32 %v277, %v350
      %352 = vdwg.mxu0
      %v353 = vxor.u32 %v349, 2147483648
      %v354 = vxor.u32 %v351, 2147483648
      %v355 = vmul.f32 %v353, 1.442695
      %v356 = vpow.pop %v355
      %v357 = vmul.f32 %v354, 1.442695
      %v358 = vpow.pop %v357
      %v359 = vadd.f32 %v356, 1.0
      %v360 = vadd.f32 %v358, 1.0
      %v361 = vrcp.pop %v359
      %v362 = vmul.f32 1.0, %v361
      %v363 = vrcp.pop %v360
      %v364 = vmul.f32 1.0, %v363
      %v365 = vld [vmem:[%s248] sm:$0xff]
      %v366 = vld [vmem:[%s248 + $0x8] sm:$0xff]
      %v367 = vld [vmem:[%s248 + $0x10] sm:$0xff]
      %v368 = vld [vmem:[%s248 + $0x18] sm:$0xff]
      %370 = vset.pattern.permute.xlu0 0
      %371 = vperm.xlu0 %370, %v365
      %v372 = vpop.permute.xlu0 %371
      %375 = vset.pattern.permute.xlu0 0
      %376 = vperm.xlu0 %375, %v366
      %v377 = vpop.permute.xlu0 %376
      %380 = vset.pattern.permute.xlu0 0
      %381 = vperm.xlu0 %380, %v367
      %v382 = vpop.permute.xlu0 %381
      %385 = vset.pattern.permute.xlu0 0
      %386 = vperm.xlu0 %385, %v368
      %v387 = vpop.permute.xlu0 %386
      %v389 = vlaneseq
      %v390 = vshrl.u32 %v389, 7
      %v391 = vsub.s32 0, %v390
      %v392 = vrot.slane %v362, %v391
      %v393 = vlaneseq
      %v394 = vshrl.u32 %v393, 7
      %v395 = vsub.s32 0, %v394
      %v396 = vrot.slane %v364, %v395
      %v397 = vadd.f32 %v372, %v392
      %v398 = vadd.f32 %v372, %v396
      %v399 = vadd.f32 %v377, %v392
      %v400 = vadd.f32 %v377, %v396
      %v401 = vadd.f32 %v382, %v392
      %v402 = vadd.f32 %v382, %v396
      %v403 = vadd.f32 %v387, %v392
      %v404 = vadd.f32 %v387, %v396
      %v405 = vmul.f32 %v259, %v397
      %v406 = vmul.f32 %v260, %v398
      %v407 = vmul.f32 %v261, %v399
      %v408 = vmul.f32 %v262, %v400
      %v409 = vmul.f32 %v263, %v401
      %v410 = vmul.f32 %v264, %v402
      %v411 = vmul.f32 %v265, %v403
      %v412 = vmul.f32 %v266, %v404
      %413 = vst [vmem:[%s257] sm:$0xff] %v405
      %414 = vst [vmem:[%s257 + $0x8] sm:$0xff] %v406
      %415 = vst [vmem:[%s257 + $0x10] sm:$0xff] %v407
      %416 = vst [vmem:[%s257 + $0x18] sm:$0xff] %v408
      %417 = vst [vmem:[%s257 + $0x20] sm:$0xff] %v409
      %418 = vst [vmem:[%s257 + $0x28] sm:$0xff] %v410
      %419 = vst [vmem:[%s257 + $0x30] sm:$0xff] %v411
      %420 = vst [vmem:[%s257 + $0x38] sm:$0xff] %v412
      %s421 = smul.u32 2, %s22
      %p422 = scmp.lt.s32.totalorder %s21, 1
      %s423 = scalar_select %p422, %s21, 1
      %p424 = scmp.lt.s32.totalorder %s421, 1
      %s425 = scalar_select %p424, %s421, 1
      %s426 = smul.addr %s423, 8
      %s427 = sadd.s32 %s425, %s426
      %s428 = smul.addr %s427, 8
      %s429 = scalar_lea.vmem %s4, %s428
      // Predicated region
      $region37: #{scse_forward.3} parent=35 // pred_check
        %p430 = pneg %p145
      $region38: #{scse_forward.3} parent=35 // pred_check_branch
        %432 = sbr.rel (%p430) target = $region40
      $region39: #{scse_forward.3} parent=35 // pred_region
        %s433 = smul.u32 2, %s22
      $region40: #{scse_forward.3} parent=35 // pred_fallthru
        _
    $region36: #{scse_forward.3} parent=5 // pred_fallthru
      _
    %p434 = scmp.le.s32.totalorder 2, %s12
    // Predicated region
    $region41: #{scse_forward.3} parent=5 // pred_check
      %p435 = pneg %p434
    $region42: #{scse_forward.3} parent=5 // pred_check_branch
      %437 = sbr.rel (%p435) target = $region44
    $region43: #{scse_forward.3} parent=5 // pred_region
      %s438 = ssub.s32 %s12, 2
      // Predicated region
      $region45: #{scse_forward.3} parent=43 // pred_check
        %p439 = pneg %p151
      $region46: #{scse_forward.3} parent=43 // pred_check_branch
        %441 = sbr.rel (%p439) target = $region48
      $region47: #{scse_forward.3} parent=43 // pred_region
        %s442 = smul.u32 2, %s24
        %p443 = scmp.lt.s32.totalorder %s23, 1
        %s444 = scalar_select %p443, %s23, 1
        %p445 = scmp.lt.s32.totalorder %s442, 1
        %s446 = scalar_select %p445, %s442, 1
        %s447 = smul.addr %s444, 8
        %s448 = sadd.s32 %s446, %s447
        %s449 = smul.addr %s448, 8
        %s450 = scalar_lea.vmem %s4, %s449
      $region48: #{scse_forward.3} parent=43 // pred_fallthru
        _
    $region44: #{scse_forward.3} parent=5 // pred_fallthru
      _
  $region6: #{scse_forward.3} parent=0 // loop_footer
    %s16 = sadd.s32 1, %s12
  $region7: #{scse_forward.3} parent=0 // loop_footer_branch
    %11 = sbr.rel target = $region3
  $region8: #{scse_forward.3} parent=0 // loop_exit
    _

</llo_original>
